<compile_context>
chip_gen: v7x
topology: tpu7x:2x2x1
jax: 0.10.0
libtpu: 0.0.40
codegen_flags: <defaults>
</compile_context>

<pallas_src>
import functools

import jax
import jax.numpy as jnp
from jax.experimental import pallas as pl
from jax.experimental.pallas import tpu as pltpu


# ---------------------------------------------------------------------------
# Fused kernel
# ---------------------------------------------------------------------------
def _fused_kernel(xT_ref, wT_ref, b_ref, tc_ref, d1_ref, d0_ref,
                  a0_ref, a1_ref, a2_ref, *, A, heads):
    N = xT_ref.shape[1]          # nodes
    C = tc_ref.shape[1]          # 2-cliques
    E = d0_ref.shape[0]          # edges
    Nout = a0_ref.shape[1]       # scatter dim_size for diagA0

    # ---- 1) fused QKV projection: one [3A, H] x [H, N] MXU matmul --------
    # rows 0:A = q^T, A:2A = k^T, 2A:3A = v^T  (feature axis on sublanes)
    qkvT = jnp.dot(wT_ref[...], xT_ref[...],
                   preferred_element_type=jnp.float32) + b_ref[...]

    # ---- 2) two-clique attention (symmetrized) ---------------------------
    niota_c = jax.lax.broadcasted_iota(jnp.int32, (N, C), 0)

    def gather_clique(slot):
        onehot = (niota_c == tc_ref[slot:slot + 1, :]).astype(jnp.float32)   # [N, C]
        return jnp.dot(qkvT, onehot, preferred_element_type=jnp.float32)     # [3A, C]

    gi = gather_clique(0)
    gj = gather_clique(1)
    gk = gather_clique(2)
    qi, ki, vi = gi[0:A, :], gi[A:2 * A, :], gi[2 * A:3 * A, :]
    qj, kj, vj = gj[0:A, :], gj[A:2 * A, :], gj[2 * A:3 * A, :]
    qk_, kk_, vk_ = gk[0:A, :], gk[A:2 * A, :], gk[2 * A:3 * A, :]

    # factored six-permutation symmetrized contraction (9 muls instead of 12)
    s = (qi * (kj * vk_ + kk_ * vj)
         + qj * (ki * vk_ + kk_ * vi)
         + qk_ * (ki * vj + kj * vi))
    pre2 = jnp.sum(s, axis=0, keepdims=True) * (1.0 / (6.0 * heads))         # [1, C]
    a2 = jnp.exp(pre2)
    a2_ref[...] = a2

    # NOTE: diagA1full (scaled-dot edge score) is intentionally not computed:
    # the reference's `torch.where(diagA1 > 0, diagA1, diagA1full)` result is
    # discarded, so it never affects (diagA0, diagA1, diagA2).

    # ---- 3) scatter clique scores -> edges (repeat(.,3) folded in) --------
    # diagA1[e] = sum_c diagA2[c] * #{r in 0..2 : d1[c, r] == e}
    eiota = jax.lax.broadcasted_iota(jnp.int32, (C, E), 1)
    mcT = ((eiota == d1_ref[:, 0:1]).astype(jnp.float32)
           + (eiota == d1_ref[:, 1:2]).astype(jnp.float32)
           + (eiota == d1_ref[:, 2:3]).astype(jnp.float32))                  # [C, E]
    a1 = jnp.dot(a2, mcT, preferred_element_type=jnp.float32)                # [1, E]
    a1_ref[...] = a1

    # ---- 4) scatter edge scores -> nodes (repeat(.,2) folded in) ----------
    # diagA0[n] = sum_e diagA1[e] * #{r in 0..1 : d0[e, r] == n}
    noiota = jax.lax.broadcasted_iota(jnp.int32, (E, Nout), 1)
    mdT = ((noiota == d0_ref[:, 0:1]).astype(jnp.float32)
           + (noiota == d0_ref[:, 1:2]).astype(jnp.float32))                 # [E, Nout]
    a0_ref[...] = jnp.dot(a1, mdT, preferred_element_type=jnp.float32)       # [1, Nout]


# ---------------------------------------------------------------------------
# Parameter init (matches init_weights: weight = 1e-5, bias = 0.01)
# Weights stored as [in_dim, out_dim] (transposed torch nn.Linear.weight).
# ---------------------------------------------------------------------------
def init_params(hidden_dim, attention_dim):
    w = jnp.full((hidden_dim, attention_dim), 1e-5, dtype=jnp.float32)
    b = jnp.full((attention_dim,), 0.01, dtype=jnp.float32)
    return dict(wq=w, bq=b, wk=w, bk=b, wv=w, bv=b)


# ---------------------------------------------------------------------------
# Forward pass wrapper (layout plumbing outside; all compute in one kernel)
# ---------------------------------------------------------------------------
@functools.partial(jax.jit, static_argnames=("heads", "n_nodes_out"))
def sparse_two_clique_attention(params, x, edge_index, d0_index,
                                twoClique_index, d1_index, *, heads,
                                n_nodes_out):
    N, H = x.shape
    A = params['wq'].shape[1]
    C = twoClique_index.shape[1]
    E = edge_index.shape[1]

    # features -> sublanes, rows -> lanes; fuse the three weights into [3A, H]
    xT = x.T.astype(jnp.float32)                                             # [H, N]
    wT = jnp.concatenate([params['wq'].T, params['wk'].T, params['wv'].T],
                         axis=0).astype(jnp.float32)                         # [3A, H]
    bcol = jnp.concatenate([params['bq'], params['bk'], params['bv']]
                           ).astype(jnp.float32).reshape(3 * A, 1)           # [3A, 1]
    tc = twoClique_index.astype(jnp.int32)                                   # [3, C]
    d1 = d1_index[1].astype(jnp.int32).reshape(C, 3)                         # [C, 3]
    d0 = d0_index[1].astype(jnp.int32).reshape(E, 2)                         # [E, 2]

    def full(shape):
        n = len(shape)
        return pl.BlockSpec(shape, lambda i: (0,) * n)

    out_shape = (jax.ShapeDtypeStruct((1, n_nodes_out), jnp.float32),        # diagA0
                 jax.ShapeDtypeStruct((1, E), jnp.float32),                  # diagA1
                 jax.ShapeDtypeStruct((1, C), jnp.float32))                  # diagA2

    a0, a1, a2 = pl.pallas_call(
        functools.partial(_fused_kernel, A=int(A), heads=float(heads)),
        grid=(1,),
        out_shape=out_shape,
        in_specs=[full((H, N)), full((3 * A, H)), full((3 * A, 1)),
                  full((3, C)), full((C, 3)), full((E, 2))],
        out_specs=(full((1, n_nodes_out)), full((1, E)), full((1, C))),
        compiler_params=pltpu.CompilerParams(
            dimension_semantics=("arbitrary",)),
    )(xT, wT, bcol, tc, d1, d0)

    return a0[0], a1[0], a2[0]


# ---------------------------------------------------------------------------
# Plain-JAX reference (mirrors the PyTorch forward) for a self-check
# ---------------------------------------------------------------------------
def _reference(params, x, edge_index, d0_index, twoClique_index, d1_index,
               heads, n_nodes_out):
    q = x @ params['wq'] + params['bq']
    k = x @ params['wk'] + params['bk']
    v = x @ params['wv'] + params['bv']
    tc = twoClique_index
    qi, qj, qk_ = q[tc[0]], q[tc[1]], q[tc[2]]
    ki, kj, kk_ = k[tc[0]], k[tc[1]], k[tc[2]]
    vi, vj, vk_ = v[tc[0]], v[tc[1]], v[tc[2]]
    pre = jnp.sum(qi * kj * vk_ + qj * kk_ * vi + qk_ * ki * vj
                  + qj * ki * vk_ + qk_ * kj * vi + qi * kk_ * vj,
                  axis=-1) / (6.0 * heads)
    diagA2 = jnp.exp(pre)
    E = edge_index.shape[1]
    cpe = jnp.repeat(diagA2, 3)
    diagA1 = jnp.zeros((E,), jnp.float32).at[d1_index[1]].add(cpe)
    epn = jnp.repeat(diagA1, 2)
    diagA0 = jnp.zeros((n_nodes_out,), jnp.float32).at[d0_index[1]].add(epn)
    return diagA0, diagA1, diagA2


if __name__ == "__main__":
    key = jax.random.PRNGKey(0)
    N, HID = 16, 32
    HEADS, ATT_RATIO = 2, 16
    A = HEADS * ATT_RATIO            # attention_dim = 32, d_k = 16
    E, C = 24, 8                     # edges, 2-cliques

    k1, k2, k3, k4, k5, k6 = jax.random.split(key, 6)
    x = jax.random.normal(k1, (N, HID), dtype=jnp.float32)
    edge_index = jax.random.randint(k2, (2, E), 0, N, dtype=jnp.int32)
    twoClique_index = jax.random.randint(k3, (3, C), 0, N, dtype=jnp.int32)

    # d1_index[1]: global edge id for each of the 3 edges of every 2-clique
    d1_index = jnp.stack([jnp.arange(3 * C, dtype=jnp.int32),
                          jax.random.randint(k4, (3 * C,), 0, E, dtype=jnp.int32)])

    # d0_index[1]: node id for each of the 2 endpoints of every edge
    d0_targets = jnp.stack([edge_index[0], edge_index[1]], axis=1).reshape(-1)
    d0_targets = d0_targets.at[-1].set(N - 1)   # ensure max index == N-1
    d0_index = jnp.stack([jnp.arange(2 * E, dtype=jnp.int32), d0_targets])

    # torch_scatter default dim_size = max(index) + 1 (computed host-side)
    out_nodes = int(jax.device_get(d0_targets).max()) + 1

    # --- run 1: module's constant init (weight=1e-5, bias=0.01) -----------
    params = init_params(HID, A)
    diagA0, diagA1, diagA2 = sparse_two_clique_attention(
        params, x, edge_index, d0_index, twoClique_index, d1_index,
        heads=HEADS, n_nodes_out=out_nodes)
    jax.block_until_ready((diagA0, diagA1, diagA2))
    assert diagA2.shape == (C,) and diagA1.shape == (E,) and diagA0.shape == (out_nodes,)

    r0, r1, r2 = _reference(params, x, edge_index, d0_index, twoClique_index,
                            d1_index, float(HEADS), out_nodes)
    assert jnp.allclose(diagA2, r2, rtol=5e-2, atol=1e-4)
    assert jnp.allclose(diagA1, r1, rtol=5e-2, atol=1e-4)
    assert jnp.allclose(diagA0, r0, rtol=5e-2, atol=1e-4)

    # --- run 2: small random weights to exercise gather/scatter indexing ---
    params2 = dict(
        wq=0.05 * jax.random.normal(k5, (HID, A), dtype=jnp.float32),
        bq=0.01 * jnp.ones((A,), jnp.float32),
        wk=0.05 * jax.random.normal(k6, (HID, A), dtype=jnp.float32),
        bk=0.01 * jnp.ones((A,), jnp.float32),
        wv=0.05 * jax.random.normal(jax.random.fold_in(key, 7), (HID, A),
                                    dtype=jnp.float32),
        bv=0.01 * jnp.ones((A,), jnp.float32),
    )
    o0, o1, o2 = sparse_two_clique_attention(
        params2, x, edge_index, d0_index, twoClique_index, d1_index,
        heads=HEADS, n_nodes_out=out_nodes)
    jax.block_until_ready((o0, o1, o2))
    s0, s1, s2 = _reference(params2, x, edge_index, d0_index, twoClique_index,
                            d1_index, float(HEADS), out_nodes)
    assert jnp.allclose(o2, s2, rtol=5e-2, atol=1e-4)
    assert jnp.allclose(o1, s1, rtol=5e-2, atol=1e-4)
    assert jnp.allclose(o0, s0, rtol=5e-2, atol=1e-4)

    print("KERNEL_OK")
</pallas_src>

<mosaic_0001>
module attributes {stable_mosaic.version = 11 : i64} {
  func.func @_fused_kernel(%arg0: i32, %arg1: memref<32x16xf32, #tpu.memory_space<vmem>>, %arg2: memref<96x32xf32, #tpu.memory_space<vmem>>, %arg3: memref<96x1xf32, #tpu.memory_space<vmem>>, %arg4: memref<3x8xi32, #tpu.memory_space<vmem>>, %arg5: memref<8x3xi32, #tpu.memory_space<vmem>>, %arg6: memref<24x2xi32, #tpu.memory_space<vmem>>, %arg7: memref<1x16xf32, #tpu.memory_space<vmem>>, %arg8: memref<1x24xf32, #tpu.memory_space<vmem>>, %arg9: memref<1x8xf32, #tpu.memory_space<vmem>>) attributes {dimension_semantics = [#tpu.dimension_semantics<arbitrary>], iteration_bounds = array<i64: 1>, scalar_prefetch = 0 : i64, scratch_operands = 0 : i64, tpu.core_type = #tpu.core_type<tc>, window_params = [{pipeline_mode = #tpu.pipeline_mode<synchronous>, transform_indices = @transform_0, window_bounds = array<i64: 32, 16>}, {pipeline_mode = #tpu.pipeline_mode<synchronous>, transform_indices = @transform_1, window_bounds = array<i64: 96, 32>}, {pipeline_mode = #tpu.pipeline_mode<synchronous>, transform_indices = @transform_2, window_bounds = array<i64: 96, 1>}, {pipeline_mode = #tpu.pipeline_mode<synchronous>, transform_indices = @transform_3, window_bounds = array<i64: 3, 8>}, {pipeline_mode = #tpu.pipeline_mode<synchronous>, transform_indices = @transform_4, window_bounds = array<i64: 8, 3>}, {pipeline_mode = #tpu.pipeline_mode<synchronous>, transform_indices = @transform_5, window_bounds = array<i64: 24, 2>}, {pipeline_mode = #tpu.pipeline_mode<synchronous>, transform_indices = @transform_6, window_bounds = array<i64: 1, 16>}, {pipeline_mode = #tpu.pipeline_mode<synchronous>, transform_indices = @transform_7, window_bounds = array<i64: 1, 24>}, {pipeline_mode = #tpu.pipeline_mode<synchronous>, transform_indices = @transform_8, window_bounds = array<i64: 1, 8>}]} {
    %c0 = arith.constant 0 : index
    %c0_0 = arith.constant 0 : index
    %0 = vector.load %arg2[%c0, %c0_0] : memref<96x32xf32, #tpu.memory_space<vmem>>, vector<96x32xf32>
    %c0_1 = arith.constant 0 : index
    %c0_2 = arith.constant 0 : index
    %1 = vector.load %arg1[%c0_1, %c0_2] : memref<32x16xf32, #tpu.memory_space<vmem>>, vector<32x16xf32>
    %cst = arith.constant dense<0.000000e+00> : vector<96x16xf32>
    %2 = tpu.matmul %0, %1, %cst {dimension_numbers = #tpu.dot_dimension_numbers<[1], [0], [0], [1], [0, 0, 1, 1], [], []>} : vector<96x32xf32>, vector<32x16xf32>, vector<96x16xf32> -> vector<96x16xf32>
    %c0_3 = arith.constant 0 : index
    %c0_4 = arith.constant 0 : index
    %3 = vector.load %arg3[%c0_3, %c0_4] : memref<96x1xf32, #tpu.memory_space<vmem>>, vector<96x1xf32>
    %4 = vector.broadcast %3 : vector<96x1xf32> to vector<96x16xf32>
    %5 = arith.addf %2, %4 : vector<96x16xf32>
    %6 = tpu.iota {dimensions = array<i32: 0>} : vector<16x8xi32>
    %c0_5 = arith.constant 0 : index
    %c0_6 = arith.constant 0 : index
    %7 = vector.load %arg4[%c0_5, %c0_6] : memref<3x8xi32, #tpu.memory_space<vmem>>, vector<1x8xi32>
    %8 = vector.broadcast %7 : vector<1x8xi32> to vector<16x8xi32>
    %9 = arith.cmpi eq, %6, %8 : vector<16x8xi32>
    %10 = arith.extui %9 : vector<16x8xi1> to vector<16x8xi32>
    %11 = arith.sitofp %10 : vector<16x8xi32> to vector<16x8xf32>
    %cst_7 = arith.constant dense<0.000000e+00> : vector<96x8xf32>
    %12 = tpu.matmul %5, %11, %cst_7 {dimension_numbers = #tpu.dot_dimension_numbers<[1], [0], [0], [1], [0, 0, 1, 1], [], []>} : vector<96x16xf32>, vector<16x8xf32>, vector<96x8xf32> -> vector<96x8xf32>
    %c1 = arith.constant 1 : index
    %c0_8 = arith.constant 0 : index
    %13 = vector.load %arg4[%c1, %c0_8] : memref<3x8xi32, #tpu.memory_space<vmem>>, vector<1x8xi32>
    %14 = vector.broadcast %13 : vector<1x8xi32> to vector<16x8xi32>
    %15 = arith.cmpi eq, %6, %14 : vector<16x8xi32>
    %16 = arith.extui %15 : vector<16x8xi1> to vector<16x8xi32>
    %17 = arith.sitofp %16 : vector<16x8xi32> to vector<16x8xf32>
    %cst_9 = arith.constant dense<0.000000e+00> : vector<96x8xf32>
    %18 = tpu.matmul %5, %17, %cst_9 {dimension_numbers = #tpu.dot_dimension_numbers<[1], [0], [0], [1], [0, 0, 1, 1], [], []>} : vector<96x16xf32>, vector<16x8xf32>, vector<96x8xf32> -> vector<96x8xf32>
    %c2 = arith.constant 2 : index
    %c0_10 = arith.constant 0 : index
    %19 = vector.load %arg4[%c2, %c0_10] : memref<3x8xi32, #tpu.memory_space<vmem>>, vector<1x8xi32>
    %20 = vector.broadcast %19 : vector<1x8xi32> to vector<16x8xi32>
    %21 = arith.cmpi eq, %6, %20 : vector<16x8xi32>
    %22 = arith.extui %21 : vector<16x8xi1> to vector<16x8xi32>
    %23 = arith.sitofp %22 : vector<16x8xi32> to vector<16x8xf32>
    %cst_11 = arith.constant dense<0.000000e+00> : vector<96x8xf32>
    %24 = tpu.matmul %5, %23, %cst_11 {dimension_numbers = #tpu.dot_dimension_numbers<[1], [0], [0], [1], [0, 0, 1, 1], [], []>} : vector<96x16xf32>, vector<16x8xf32>, vector<96x8xf32> -> vector<96x8xf32>
    %25 = vector.extract_strided_slice %12 {offsets = [0, 0], sizes = [32, 8], strides = [1, 1]} : vector<96x8xf32> to vector<32x8xf32>
    %26 = vector.extract_strided_slice %12 {offsets = [32, 0], sizes = [32, 8], strides = [1, 1]} : vector<96x8xf32> to vector<32x8xf32>
    %27 = vector.extract_strided_slice %12 {offsets = [64, 0], sizes = [32, 8], strides = [1, 1]} : vector<96x8xf32> to vector<32x8xf32>
    %28 = vector.extract_strided_slice %18 {offsets = [0, 0], sizes = [32, 8], strides = [1, 1]} : vector<96x8xf32> to vector<32x8xf32>
    %29 = vector.extract_strided_slice %18 {offsets = [32, 0], sizes = [32, 8], strides = [1, 1]} : vector<96x8xf32> to vector<32x8xf32>
    %30 = vector.extract_strided_slice %18 {offsets = [64, 0], sizes = [32, 8], strides = [1, 1]} : vector<96x8xf32> to vector<32x8xf32>
    %31 = vector.extract_strided_slice %24 {offsets = [0, 0], sizes = [32, 8], strides = [1, 1]} : vector<96x8xf32> to vector<32x8xf32>
    %32 = vector.extract_strided_slice %24 {offsets = [32, 0], sizes = [32, 8], strides = [1, 1]} : vector<96x8xf32> to vector<32x8xf32>
    %33 = vector.extract_strided_slice %24 {offsets = [64, 0], sizes = [32, 8], strides = [1, 1]} : vector<96x8xf32> to vector<32x8xf32>
    %34 = arith.mulf %29, %33 : vector<32x8xf32>
    %35 = arith.mulf %32, %30 : vector<32x8xf32>
    %36 = arith.addf %34, %35 : vector<32x8xf32>
    %37 = arith.mulf %25, %36 : vector<32x8xf32>
    %38 = arith.mulf %26, %33 : vector<32x8xf32>
    %39 = arith.mulf %32, %27 : vector<32x8xf32>
    %40 = arith.addf %38, %39 : vector<32x8xf32>
    %41 = arith.mulf %28, %40 : vector<32x8xf32>
    %42 = arith.addf %37, %41 : vector<32x8xf32>
    %43 = arith.mulf %26, %30 : vector<32x8xf32>
    %44 = arith.mulf %29, %27 : vector<32x8xf32>
    %45 = arith.addf %43, %44 : vector<32x8xf32>
    %46 = arith.mulf %31, %45 : vector<32x8xf32>
    %47 = arith.addf %42, %46 : vector<32x8xf32>
    %cst_12 = arith.constant dense<0.000000e+00> : vector<8xf32>
    %48 = vector.multi_reduction <add>, %47, %cst_12 [0] : vector<32x8xf32> to vector<8xf32>
    %49 = vector.shape_cast %48 : vector<8xf32> to vector<1x8xf32>
    %cst_13 = arith.constant 0.0833333358 : f32
    %50 = vector.broadcast %cst_13 : f32 to vector<1x8xf32>
    %51 = arith.mulf %49, %50 : vector<1x8xf32>
    %52 = math.exp %51 : vector<1x8xf32>
    %c0_14 = arith.constant 0 : index
    %c0_15 = arith.constant 0 : index
    %53 = vector.load %arg9[%c0_14, %c0_15] : memref<1x8xf32, #tpu.memory_space<vmem>>, vector<1x8xf32>
    tpu.vector_store %arg9[%c0_14, %c0_15], %52 {strides = array<i32>} : memref<1x8xf32, #tpu.memory_space<vmem>>, vector<1x8xf32>,
    %54 = tpu.iota {dimensions = array<i32: 1>} : vector<8x24xi32>
    %c0_16 = arith.constant 0 : index
    %c0_17 = arith.constant 0 : index
    %55 = vector.load %arg5[%c0_16, %c0_17] : memref<8x3xi32, #tpu.memory_space<vmem>>, vector<8x1xi32>
    %56 = vector.broadcast %55 : vector<8x1xi32> to vector<8x24xi32>
    %57 = arith.cmpi eq, %54, %56 : vector<8x24xi32>
    %58 = arith.extui %57 : vector<8x24xi1> to vector<8x24xi32>
    %59 = arith.sitofp %58 : vector<8x24xi32> to vector<8x24xf32>
    %c0_18 = arith.constant 0 : index
    %c1_19 = arith.constant 1 : index
    %60 = vector.load %arg5[%c0_18, %c1_19] : memref<8x3xi32, #tpu.memory_space<vmem>>, vector<8x1xi32>
    %61 = vector.broadcast %60 : vector<8x1xi32> to vector<8x24xi32>
    %62 = arith.cmpi eq, %54, %61 : vector<8x24xi32>
    %63 = arith.extui %62 : vector<8x24xi1> to vector<8x24xi32>
    %64 = arith.sitofp %63 : vector<8x24xi32> to vector<8x24xf32>
    %65 = arith.addf %59, %64 : vector<8x24xf32>
    %c0_20 = arith.constant 0 : index
    %c2_21 = arith.constant 2 : index
    %66 = vector.load %arg5[%c0_20, %c2_21] : memref<8x3xi32, #tpu.memory_space<vmem>>, vector<8x1xi32>
    %67 = vector.broadcast %66 : vector<8x1xi32> to vector<8x24xi32>
    %68 = arith.cmpi eq, %54, %67 : vector<8x24xi32>
    %69 = arith.extui %68 : vector<8x24xi1> to vector<8x24xi32>
    %70 = arith.sitofp %69 : vector<8x24xi32> to vector<8x24xf32>
    %71 = arith.addf %65, %70 : vector<8x24xf32>
    %cst_22 = arith.constant dense<0.000000e+00> : vector<1x24xf32>
    %72 = tpu.matmul %52, %71, %cst_22 {dimension_numbers = #tpu.dot_dimension_numbers<[1], [0], [0], [1], [0, 0, 1, 1], [], []>} : vector<1x8xf32>, vector<8x24xf32>, vector<1x24xf32> -> vector<1x24xf32>
    %c0_23 = arith.constant 0 : index
    %c0_24 = arith.constant 0 : index
    %73 = vector.load %arg8[%c0_23, %c0_24] : memref<1x24xf32, #tpu.memory_space<vmem>>, vector<1x24xf32>
    tpu.vector_store %arg8[%c0_23, %c0_24], %72 {strides = array<i32>} : memref<1x24xf32, #tpu.memory_space<vmem>>, vector<1x24xf32>,
    %74 = tpu.iota {dimensions = array<i32: 1>} : vector<24x16xi32>
    %c0_25 = arith.constant 0 : index
    %c0_26 = arith.constant 0 : index
    %75 = vector.load %arg6[%c0_25, %c0_26] : memref<24x2xi32, #tpu.memory_space<vmem>>, vector<24x1xi32>
    %76 = vector.broadcast %75 : vector<24x1xi32> to vector<24x16xi32>
    %77 = arith.cmpi eq, %74, %76 : vector<24x16xi32>
    %78 = arith.extui %77 : vector<24x16xi1> to vector<24x16xi32>
    %79 = arith.sitofp %78 : vector<24x16xi32> to vector<24x16xf32>
    %c0_27 = arith.constant 0 : index
    %c1_28 = arith.constant 1 : index
    %80 = vector.load %arg6[%c0_27, %c1_28] : memref<24x2xi32, #tpu.memory_space<vmem>>, vector<24x1xi32>
    %81 = vector.broadcast %80 : vector<24x1xi32> to vector<24x16xi32>
    %82 = arith.cmpi eq, %74, %81 : vector<24x16xi32>
    %83 = arith.extui %82 : vector<24x16xi1> to vector<24x16xi32>
    %84 = arith.sitofp %83 : vector<24x16xi32> to vector<24x16xf32>
    %85 = arith.addf %79, %84 : vector<24x16xf32>
    %cst_29 = arith.constant dense<0.000000e+00> : vector<1x16xf32>
    %86 = tpu.matmul %72, %85, %cst_29 {dimension_numbers = #tpu.dot_dimension_numbers<[1], [0], [0], [1], [0, 0, 1, 1], [], []>} : vector<1x24xf32>, vector<24x16xf32>, vector<1x16xf32> -> vector<1x16xf32>
    %c0_30 = arith.constant 0 : index
    %c0_31 = arith.constant 0 : index
    %87 = vector.load %arg7[%c0_30, %c0_31] : memref<1x16xf32, #tpu.memory_space<vmem>>, vector<1x16xf32>
    tpu.vector_store %arg7[%c0_30, %c0_31], %86 {strides = array<i32>} : memref<1x16xf32, #tpu.memory_space<vmem>>, vector<1x16xf32>,
    return
  }
  func.func @transform_0(%arg0: i32) -> (i32, i32) {
    %c0_i32 = arith.constant 0 : i32
    %c0_i32_0 = arith.constant 0 : i32
    %c0_i32_1 = arith.constant 0 : i32
    return %c0_i32, %c0_i32_0 : i32, i32
  }
  func.func @transform_1(%arg0: i32) -> (i32, i32) {
    %c0_i32 = arith.constant 0 : i32
    %c0_i32_0 = arith.constant 0 : i32
    %c0_i32_1 = arith.constant 0 : i32
    return %c0_i32, %c0_i32_0 : i32, i32
  }
  func.func @transform_2(%arg0: i32) -> (i32, i32) {
    %c0_i32 = arith.constant 0 : i32
    %c0_i32_0 = arith.constant 0 : i32
    %c0_i32_1 = arith.constant 0 : i32
    return %c0_i32, %c0_i32_0 : i32, i32
  }
  func.func @transform_3(%arg0: i32) -> (i32, i32) {
    %c0_i32 = arith.constant 0 : i32
    %c0_i32_0 = arith.constant 0 : i32
    %c0_i32_1 = arith.constant 0 : i32
    return %c0_i32, %c0_i32_0 : i32, i32
  }
  func.func @transform_4(%arg0: i32) -> (i32, i32) {
    %c0_i32 = arith.constant 0 : i32
    %c0_i32_0 = arith.constant 0 : i32
    %c0_i32_1 = arith.constant 0 : i32
    return %c0_i32, %c0_i32_0 : i32, i32
  }
  func.func @transform_5(%arg0: i32) -> (i32, i32) {
    %c0_i32 = arith.constant 0 : i32
    %c0_i32_0 = arith.constant 0 : i32
    %c0_i32_1 = arith.constant 0 : i32
    return %c0_i32, %c0_i32_0 : i32, i32
  }
  func.func @transform_6(%arg0: i32) -> (i32, i32) {
    %c0_i32 = arith.constant 0 : i32
    %c0_i32_0 = arith.constant 0 : i32
    %c0_i32_1 = arith.constant 0 : i32
    return %c0_i32, %c0_i32_0 : i32, i32
  }
  func.func @transform_7(%arg0: i32) -> (i32, i32) {
    %c0_i32 = arith.constant 0 : i32
    %c0_i32_0 = arith.constant 0 : i32
    %c0_i32_1 = arith.constant 0 : i32
    return %c0_i32, %c0_i32_0 : i32, i32
  }
  func.func @transform_8(%arg0: i32) -> (i32, i32) {
    %c0_i32 = arith.constant 0 : i32
    %c0_i32_0 = arith.constant 0 : i32
    %c0_i32_1 = arith.constant 0 : i32
    return %c0_i32, %c0_i32_0 : i32, i32
  }
}

</mosaic_0001>

<llo_original>
// kernel: squeeze.5
$region0: #{squeeze.5}
  %s0 = inlined_call_operand.vmem [shape: s32[24], index: 0, kind: input, shape index: {}]
  %s1 = inlined_call_operand.vmem [shape: s32[8,3], index: 1, kind: output, shape index: {}]
  $region1: #{squeeze.5} parent=0
    #allocation0 [shape = 'u8[4096]{0}', space=vmem, size = 0x1000, scoped, tag = 'scoped mem for input reshape']
    %s3 = sshllo.u32 0, 1
    %v4 = vld [vmem:[%s0] sm:%s3]
    %5 = vst [vmem:[#allocation0] sm:%s3] %v4
    %v6 = vld [vmem:[#allocation0] sm:$0x1]
    %vm7 = vcmask 23552
    %8 = vst.msk [vmem:[%s1] sm:$0x1] %vm7, %v6
    %v9 = vld [vmem:[#allocation0] sm:$0x1]
    %10 = vrot.lane.b32.xlu0 %v9, 125
    %v11 = vpop.permute.xlu0 %10
    %vm12 = vcmask 23552
    %s13 = scalar_lea.vmem %s1, 1
    %14 = vst.msk [vmem:[%s13] sm:$0x1] %vm12, %v11
    %v15 = vld [vmem:[#allocation0] sm:$0x1]
    %16 = vrot.lane.b32.xlu0 %v15, 122
    %v17 = vpop.permute.xlu0 %16
    %vm18 = vcmask 23552
    %s19 = scalar_lea.vmem %s1, 2
    %20 = vst.msk [vmem:[%s19] sm:$0x1] %vm18, %v17
    %v21 = vld [vmem:[#allocation0] sm:$0x1]
    %22 = vrot.lane.b32.xlu0 %v21, 119
    %v23 = vpop.permute.xlu0 %22
    %vm24 = vcmask 23552
    %s25 = scalar_lea.vmem %s1, 3
    %26 = vst.msk [vmem:[%s25] sm:$0x1] %vm24, %v23
    %v27 = vld [vmem:[#allocation0] sm:$0x1]
    %28 = vrot.lane.b32.xlu0 %v27, 116
    %v29 = vpop.permute.xlu0 %28
    %vm30 = vcmask 23552
    %s31 = scalar_lea.vmem %s1, 4
    %32 = vst.msk [vmem:[%s31] sm:$0x1] %vm30, %v29
    %v33 = vld [vmem:[#allocation0] sm:$0x1]
    %34 = vrot.lane.b32.xlu0 %v33, 113
    %v35 = vpop.permute.xlu0 %34
    %vm36 = vcmask 23552
    %s37 = scalar_lea.vmem %s1, 5
    %38 = vst.msk [vmem:[%s37] sm:$0x1] %vm36, %v35
    %v39 = vld [vmem:[#allocation0] sm:$0x1]
    %40 = vrot.lane.b32.xlu0 %v39, 110
    %v41 = vpop.permute.xlu0 %40
    %vm42 = vcmask 23552
    %s43 = scalar_lea.vmem %s1, 6
    %44 = vst.msk [vmem:[%s43] sm:$0x1] %vm42, %v41
    %v45 = vld [vmem:[#allocation0] sm:$0x1]
    %46 = vrot.lane.b32.xlu0 %v45, 107
    %v47 = vpop.permute.xlu0 %46
    %vm48 = vcmask 23552
    %s49 = scalar_lea.vmem %s1, 7
    %50 = vst.msk [vmem:[%s49] sm:$0x1] %vm48, %v47

// kernel: squeeze.6
$region0: #{squeeze.6}
  %s0 = inlined_call_operand.vmem [shape: s32[48], index: 0, kind: input, shape index: {}]
  %s1 = inlined_call_operand.vmem [shape: s32[24,2], index: 1, kind: output, shape index: {}]
  $region1: #{squeeze.6} parent=0
    #allocation0 [shape = 'u8[4096]{0}', space=vmem, size = 0x1000, scoped, tag = 'scoped mem for input reshape']
    %s3 = sshllo.u32 0, 1
    %v4 = vld [vmem:[%s0] sm:%s3]
    %5 = vst [vmem:[#allocation0] sm:%s3] %v4
    %v6 = vld [vmem:[#allocation0] sm:$0x1]
    %vm7 = vcmask 15360
    %8 = vst.msk [vmem:[%s1] sm:$0x1] %vm7, %v6
    %v9 = vld [vmem:[#allocation0] sm:$0x1]
    %10 = vrot.lane.b32.xlu0 %v9, 126
    %v11 = vpop.permute.xlu0 %10
    %vm12 = vcmask 15360
    %s13 = scalar_lea.vmem %s1, 1
    %14 = vst.msk [vmem:[%s13] sm:$0x1] %vm12, %v11
    %v15 = vld [vmem:[#allocation0] sm:$0x1]
    %16 = vrot.lane.b32.xlu0 %v15, 124
    %v17 = vpop.permute.xlu0 %16
    %vm18 = vcmask 15360
    %s19 = scalar_lea.vmem %s1, 2
    %20 = vst.msk [vmem:[%s19] sm:$0x1] %vm18, %v17
    %v21 = vld [vmem:[#allocation0] sm:$0x1]
    %22 = vrot.lane.b32.xlu0 %v21, 122
    %v23 = vpop.permute.xlu0 %22
    %vm24 = vcmask 15360
    %s25 = scalar_lea.vmem %s1, 3
    %26 = vst.msk [vmem:[%s25] sm:$0x1] %vm24, %v23
    %v27 = vld [vmem:[#allocation0] sm:$0x1]
    %28 = vrot.lane.b32.xlu0 %v27, 120
    %v29 = vpop.permute.xlu0 %28
    %vm30 = vcmask 15360
    %s31 = scalar_lea.vmem %s1, 4
    %32 = vst.msk [vmem:[%s31] sm:$0x1] %vm30, %v29
    %v33 = vld [vmem:[#allocation0] sm:$0x1]
    %34 = vrot.lane.b32.xlu0 %v33, 118
    %v35 = vpop.permute.xlu0 %34
    %vm36 = vcmask 15360
    %s37 = scalar_lea.vmem %s1, 5
    %38 = vst.msk [vmem:[%s37] sm:$0x1] %vm36, %v35
    %v39 = vld [vmem:[#allocation0] sm:$0x1]
    %40 = vrot.lane.b32.xlu0 %v39, 116
    %v41 = vpop.permute.xlu0 %40
    %vm42 = vcmask 15360
    %s43 = scalar_lea.vmem %s1, 6
    %44 = vst.msk [vmem:[%s43] sm:$0x1] %vm42, %v41
    %v45 = vld [vmem:[#allocation0] sm:$0x1]
    %46 = vrot.lane.b32.xlu0 %v45, 114
    %v47 = vpop.permute.xlu0 %46
    %vm48 = vcmask 15360
    %s49 = scalar_lea.vmem %s1, 7
    %50 = vst.msk [vmem:[%s49] sm:$0x1] %vm48, %v47
    %v51 = vld [vmem:[#allocation0] sm:$0x1]
    %52 = vrot.lane.b32.xlu0 %v51, 112
    %v53 = vpop.permute.xlu0 %52
    %vm54 = vcmask 15360
    %s55 = scalar_lea.vmem %s1, 8
    %56 = vst.msk [vmem:[%s55] sm:$0x1] %vm54, %v53
    %v57 = vld [vmem:[#allocation0] sm:$0x1]
    %58 = vrot.lane.b32.xlu0 %v57, 110
    %v59 = vpop.permute.xlu0 %58
    %vm60 = vcmask 15360
    %s61 = scalar_lea.vmem %s1, 9
    %62 = vst.msk [vmem:[%s61] sm:$0x1] %vm60, %v59
    %v63 = vld [vmem:[#allocation0] sm:$0x1]
    %64 = vrot.lane.b32.xlu0 %v63, 108
    %v65 = vpop.permute.xlu0 %64
    %vm66 = vcmask 15360
    %s67 = scalar_lea.vmem %s1, 10
    %68 = vst.msk [vmem:[%s67] sm:$0x1] %vm66, %v65
    %v69 = vld [vmem:[#allocation0] sm:$0x1]
    %70 = vrot.lane.b32.xlu0 %v69, 106
    %v71 = vpop.permute.xlu0 %70
    %vm72 = vcmask 15360
    %s73 = scalar_lea.vmem %s1, 11
    %74 = vst.msk [vmem:[%s73] sm:$0x1] %vm72, %v71
    %v75 = vld [vmem:[#allocation0] sm:$0x1]
    %76 = vrot.lane.b32.xlu0 %v75, 104
    %v77 = vpop.permute.xlu0 %76
    %vm78 = vcmask 15360
    %s79 = scalar_lea.vmem %s1, 12
    %80 = vst.msk [vmem:[%s79] sm:$0x1] %vm78, %v77
    %v81 = vld [vmem:[#allocation0] sm:$0x1]
    %82 = vrot.lane.b32.xlu0 %v81, 102
    %v83 = vpop.permute.xlu0 %82
    %vm84 = vcmask 15360
    %s85 = scalar_lea.vmem %s1, 13
    %86 = vst.msk [vmem:[%s85] sm:$0x1] %vm84, %v83
    %v87 = vld [vmem:[#allocation0] sm:$0x1]
    %88 = vrot.lane.b32.xlu0 %v87, 100
    %v89 = vpop.permute.xlu0 %88
    %vm90 = vcmask 15360
    %s91 = scalar_lea.vmem %s1, 14
    %92 = vst.msk [vmem:[%s91] sm:$0x1] %vm90, %v89
    %v93 = vld [vmem:[#allocation0] sm:$0x1]
    %94 = vrot.lane.b32.xlu0 %v93, 98
    %v95 = vpop.permute.xlu0 %94
    %vm96 = vcmask 15360
    %s97 = scalar_lea.vmem %s1, 15
    %98 = vst.msk [vmem:[%s97] sm:$0x1] %vm96, %v95
    %v99 = vld [vmem:[#allocation0] sm:$0x1]
    %100 = vrot.lane.b32.xlu0 %v99, 96
    %v101 = vpop.permute.xlu0 %100
    %vm102 = vcmask 15360
    %s103 = scalar_lea.vmem %s1, 16
    %104 = vst.msk [vmem:[%s103] sm:$0x1] %vm102, %v101
    %v105 = vld [vmem:[#allocation0] sm:$0x1]
    %106 = vrot.lane.b32.xlu0 %v105, 94
    %v107 = vpop.permute.xlu0 %106
    %vm108 = vcmask 15360
    %s109 = scalar_lea.vmem %s1, 17
    %110 = vst.msk [vmem:[%s109] sm:$0x1] %vm108, %v107
    %v111 = vld [vmem:[#allocation0] sm:$0x1]
    %112 = vrot.lane.b32.xlu0 %v111, 92
    %v113 = vpop.permute.xlu0 %112
    %vm114 = vcmask 15360
    %s115 = scalar_lea.vmem %s1, 18
    %116 = vst.msk [vmem:[%s115] sm:$0x1] %vm114, %v113
    %v117 = vld [vmem:[#allocation0] sm:$0x1]
    %118 = vrot.lane.b32.xlu0 %v117, 90
    %v119 = vpop.permute.xlu0 %118
    %vm120 = vcmask 15360
    %s121 = scalar_lea.vmem %s1, 19
    %122 = vst.msk [vmem:[%s121] sm:$0x1] %vm120, %v119
    %v123 = vld [vmem:[#allocation0] sm:$0x1]
    %124 = vrot.lane.b32.xlu0 %v123, 88
    %v125 = vpop.permute.xlu0 %124
    %vm126 = vcmask 15360
    %s127 = scalar_lea.vmem %s1, 20
    %128 = vst.msk [vmem:[%s127] sm:$0x1] %vm126, %v125
    %v129 = vld [vmem:[#allocation0] sm:$0x1]
    %130 = vrot.lane.b32.xlu0 %v129, 86
    %v131 = vpop.permute.xlu0 %130
    %vm132 = vcmask 15360
    %s133 = scalar_lea.vmem %s1, 21
    %134 = vst.msk [vmem:[%s133] sm:$0x1] %vm132, %v131
    %v135 = vld [vmem:[#allocation0] sm:$0x1]
    %136 = vrot.lane.b32.xlu0 %v135, 84
    %v137 = vpop.permute.xlu0 %136
    %vm138 = vcmask 15360
    %s139 = scalar_lea.vmem %s1, 22
    %140 = vst.msk [vmem:[%s139] sm:$0x1] %vm138, %v137
    %v141 = vld [vmem:[#allocation0] sm:$0x1]
    %142 = vrot.lane.b32.xlu0 %v141, 82
    %v143 = vpop.permute.xlu0 %142
    %vm144 = vcmask 15360
    %s145 = scalar_lea.vmem %s1, 23
    %146 = vst.msk [vmem:[%s145] sm:$0x1] %vm144, %v143

// kernel: sparse_two_clique_attention.1
$region0: #{sparse_two_clique_attention.1}
  #allocation0 [shape = 'u32[]', space=smem, size = 0x4, offset = 0x4, fixed_abs, tag = 'smem constant byte address 0x4 - core index']
  #allocation1 [shape = 'u32[144,128]{1,0:T(1,128)}', space=vmem, size = 0x12000, scoped, tag = 'internal scratch']
  %s0 = inlined_call_operand.vmem [shape: f32[32,16], index: 0, kind: input, shape index: {}]
  %s1 = inlined_call_operand.vmem [shape: f32[96,32], index: 1, kind: input, shape index: {}]
  %s2 = inlined_call_operand.vmem [shape: f32[96,1], index: 2, kind: input, shape index: {}]
  %s3 = inlined_call_operand.vmem [shape: s32[3,8], index: 3, kind: input, shape index: {}]
  %s4 = inlined_call_operand.vmem [shape: s32[8,3], index: 4, kind: input, shape index: {}]
  %s5 = inlined_call_operand.vmem [shape: s32[24,2], index: 5, kind: input, shape index: {}]
  %s6 = inlined_call_operand.hbm [shape: f32[1,16], index: 6, kind: output, shape index: {0}]
  %s7 = inlined_call_operand.hbm [shape: f32[1,24], index: 7, kind: output, shape index: {1}]
  %s8 = inlined_call_operand.hbm [shape: f32[1,8], index: 8, kind: output, shape index: {2}]
  %9 = xla_tuple %s6, %s7, %s8
  %s10 = sld [smem:[#allocation0]]
  $region50: #{sparse_two_clique_attention.1} parent=0
    _
  %s12 = ssub.s32 1, %s10
  %s13 = scalar_select 0, %s12, %s10
  $region1: #{sparse_two_clique_attention.1} parent=0
    #allocation2 [shape = 'u8[512]{0}', space=vmem, size = 0x400, scoped, tag = 'output window, operand 0, single buffered']
    #allocation3 [shape = 's32[1]{0}', space=sflag, size = 0x4, scoped, tag = 'scoped memory for sparse_two_clique_attention.1']
    #allocation4 [shape = 'u8[512]{0}', space=vmem, size = 0x400, scoped, tag = 'output window, operand 1, single buffered']
    #allocation5 [shape = 's32[1]{0}', space=sflag, size = 0x4, scoped, tag = 'scoped memory for sparse_two_clique_attention.1']
    #allocation6 [shape = 'u8[512]{0}', space=vmem, size = 0x400, scoped, tag = 'output window, operand 2, single buffered']
    %14 = vsyncpa [#allocation3], 0
    %15 = vsyncpa [#allocation5], 0
    // Predicated region
    $region2: #{sparse_two_clique_attention.1} parent=1 // pred_check
      _
    $region3: #{sparse_two_clique_attention.1} parent=1 // pred_check_branch
      %17 = sbr.rel (0) target = $region5
    $region4: #{sparse_two_clique_attention.1} parent=1 // pred_region
      _
    $region5: #{sparse_two_clique_attention.1} parent=1 // pred_fallthru
      _
    // Predicated region
    $region6: #{sparse_two_clique_attention.1} parent=1 // pred_check
      _
    $region7: #{sparse_two_clique_attention.1} parent=1 // pred_check_branch
      %19 = sbr.rel (0) target = $region9
    $region8: #{sparse_two_clique_attention.1} parent=1 // pred_region
      _
    $region9: #{sparse_two_clique_attention.1} parent=1 // pred_fallthru
      _
    // Predicated region
    $region10: #{sparse_two_clique_attention.1} parent=1 // pred_check
      _
    $region11: #{sparse_two_clique_attention.1} parent=1 // pred_check_branch
      %21 = sbr.rel (0) target = $region13
    $region12: #{sparse_two_clique_attention.1} parent=1 // pred_region
      _
    $region13: #{sparse_two_clique_attention.1} parent=1 // pred_fallthru
      _
    // Predicated region
    $region14: #{sparse_two_clique_attention.1} parent=1 // pred_check
      _
    $region15: #{sparse_two_clique_attention.1} parent=1 // pred_check_branch
      %23 = sbr.rel (0) target = $region17
    $region16: #{sparse_two_clique_attention.1} parent=1 // pred_region
      _
    $region17: #{sparse_two_clique_attention.1} parent=1 // pred_fallthru
      _
    // Predicated region
    $region18: #{sparse_two_clique_attention.1} parent=1 // pred_check
      _
    $region19: #{sparse_two_clique_attention.1} parent=1 // pred_check_branch
      %25 = sbr.rel (0) target = $region21
    $region20: #{sparse_two_clique_attention.1} parent=1 // pred_region
      _
    $region21: #{sparse_two_clique_attention.1} parent=1 // pred_fallthru
      _
    // Predicated region
    $region22: #{sparse_two_clique_attention.1} parent=1 // pred_check
      _
    $region23: #{sparse_two_clique_attention.1} parent=1 // pred_check_branch
      %27 = sbr.rel (0) target = $region25
    $region24: #{sparse_two_clique_attention.1} parent=1 // pred_region
      _
    $region25: #{sparse_two_clique_attention.1} parent=1 // pred_fallthru
      _
    %v28 = vld [vmem:[%s1] sm:$0xff]
    %v29 = vld [vmem:[%s1 + $0x8] sm:$0xff]
    %v30 = vld [vmem:[%s1 + $0x10] sm:$0xff]
    %v31 = vld [vmem:[%s1 + $0x18] sm:$0xff]
    %v32 = vld [vmem:[%s1 + $0x20] sm:$0xff]
    %v33 = vld [vmem:[%s1 + $0x28] sm:$0xff]
    %v34 = vld [vmem:[%s1 + $0x30] sm:$0xff]
    %v35 = vld [vmem:[%s1 + $0x38] sm:$0xff]
    %v36 = vld [vmem:[%s1 + $0x40] sm:$0xff]
    %v37 = vld [vmem:[%s1 + $0x48] sm:$0xff]
    %v38 = vld [vmem:[%s1 + $0x50] sm:$0xff]
    %v39 = vld [vmem:[%s1 + $0x58] sm:$0xff]
    %v40 = vld [vmem:[%s0] sm:$0xff]
    %v41 = vld [vmem:[%s0 + $0x8] sm:$0xff]
    %v42 = vld [vmem:[%s0 + $0x10] sm:$0xff]
    %v43 = vld [vmem:[%s0 + $0x18] sm:$0xff]
    %v44 = vld [vmem:[%s2] sm:$0xff]
    %v45 = vld [vmem:[%s2 + $0x8] sm:$0xff]
    %v46 = vld [vmem:[%s2 + $0x10] sm:$0xff]
    %v47 = vld [vmem:[%s2 + $0x18] sm:$0xff]
    %v48 = vld [vmem:[%s2 + $0x20] sm:$0xff]
    %v49 = vld [vmem:[%s2 + $0x28] sm:$0xff]
    %v50 = vld [vmem:[%s2 + $0x30] sm:$0xff]
    %v51 = vld [vmem:[%s2 + $0x38] sm:$0xff]
    %v52 = vld [vmem:[%s2 + $0x40] sm:$0xff]
    %v53 = vld [vmem:[%s2 + $0x48] sm:$0xff]
    %v54 = vld [vmem:[%s2 + $0x50] sm:$0xff]
    %v55 = vld [vmem:[%s2 + $0x58] sm:$0xff]
    %57 = vset.pattern.permute.xlu0 0
    %58 = vperm.xlu0 %57, %v44
    %v59 = vpop.permute.xlu0 %58
    %62 = vset.pattern.permute.xlu0 0
    %63 = vperm.xlu0 %62, %v45
    %v64 = vpop.permute.xlu0 %63
    %67 = vset.pattern.permute.xlu0 0
    %68 = vperm.xlu0 %67, %v46
    %v69 = vpop.permute.xlu0 %68
    %72 = vset.pattern.permute.xlu0 0
    %73 = vperm.xlu0 %72, %v47
    %v74 = vpop.permute.xlu0 %73
    %77 = vset.pattern.permute.xlu0 0
    %78 = vperm.xlu0 %77, %v48
    %v79 = vpop.permute.xlu0 %78
    %82 = vset.pattern.permute.xlu0 0
    %83 = vperm.xlu0 %82, %v49
    %v84 = vpop.permute.xlu0 %83
    %87 = vset.pattern.permute.xlu0 0
    %88 = vperm.xlu0 %87, %v50
    %v89 = vpop.permute.xlu0 %88
    %92 = vset.pattern.permute.xlu0 0
    %93 = vperm.xlu0 %92, %v51
    %v94 = vpop.permute.xlu0 %93
    %97 = vset.pattern.permute.xlu0 0
    %98 = vperm.xlu0 %97, %v52
    %v99 = vpop.permute.xlu0 %98
    %102 = vset.pattern.permute.xlu0 0
    %103 = vperm.xlu0 %102, %v53
    %v104 = vpop.permute.xlu0 %103
    %107 = vset.pattern.permute.xlu0 0
    %108 = vperm.xlu0 %107, %v54
    %v109 = vpop.permute.xlu0 %108
    %112 = vset.pattern.permute.xlu0 0
    %113 = vperm.xlu0 %112, %v55
    %v114 = vpop.permute.xlu0 %113
    %vm116 = vcmask 261120
    %v118 = vsel %vm116, %v28, 0
    %v121 = vsel %vm116, %v29, 0
    %v124 = vsel %vm116, %v30, 0
    %v127 = vsel %vm116, %v31, 0
    %v130 = vsel %vm116, %v32, 0
    %v133 = vsel %vm116, %v33, 0
    %v136 = vsel %vm116, %v34, 0
    %v139 = vsel %vm116, %v35, 0
    %v142 = vsel %vm116, %v36, 0
    %v145 = vsel %vm116, %v37, 0
    %v148 = vsel %vm116, %v38, 0
    %v151 = vsel %vm116, %v39, 0
    %153 = vmatprep.subr.mxu0 0.0
    %154 = vmatpush1.msra.mxu0 %v40
    %155 = vmatprep.subr.mxu0 0.0
    %156 = vmatpush1.msra.mxu0 %v41
    %157 = vmatprep.subr.mxu0 0.0
    %158 = vmatpush1.msra.mxu0 %v42
    %159 = vmatprep.subr.mxu0 0.0
    %160 = vmatpush1.msra.mxu0 %v43
    %161 = vmatprep.subr.mxu0 0.0
    %162 = vmatpush1.msra.mxu0 0.0
    %163 = vmatprep.subr.mxu0 0.0
    %164 = vmatpush1.msra.mxu0 0.0
    %165 = vmatprep.subr.mxu0 0.0
    %166 = vmatpush1.msra.mxu0 0.0
    %167 = vmatprep.subr.mxu0 0.0
    %168 = vmatpush1.msra.mxu0 0.0
    %169 = vmatprep.subr.mxu0 0.0
    %170 = vmatpush1.msra.mxu0 0.0
    %171 = vmatprep.subr.mxu0 0.0
    %172 = vmatpush1.msra.mxu0 0.0
    %173 = vmatprep.subr.mxu0 0.0
    %174 = vmatpush1.msra.mxu0 0.0
    %175 = vmatprep.subr.mxu0 0.0
    %176 = vmatpush1.msra.mxu0 0.0
    %177 = vmatprep.subr.mxu0 0.0
    %178 = vmatpush1.msra.mxu0 0.0
    %179 = vmatprep.subr.mxu0 0.0
    %180 = vmatpush1.msra.mxu0 0.0
    %181 = vmatprep.subr.mxu0 0.0
    %182 = vmatpush1.msra.mxu0 0.0
    %183 = vmatprep.subr.mxu0 0.0
    %184 = vmatpush1.msra.mxu0 0.0
    %185 = vmatprep.subr.mxu0 0.0
    %186 = vmatpush1.msra.mxu0 0.0
    %187 = vmatprep.subr.mxu0 0.0
    %188 = vmatpush1.msra.mxu0 0.0
    %189 = vmatprep.subr.mxu0 0.0
    %190 = vmatpush1.msra.mxu0 0.0
    %191 = vmatprep.subr.mxu0 0.0
    %192 = vmatpush1.msra.mxu0 0.0
    %193 = vmatprep.subr.mxu0 0.0
    %194 = vmatpush1.msra.mxu0 0.0
    %195 = vmatprep.subr.mxu0 0.0
    %196 = vmatpush1.msra.mxu0 0.0
    %197 = vmatprep.subr.mxu0 0.0
    %198 = vmatpush1.msra.mxu0 0.0
    %199 = vmatprep.subr.mxu0 0.0
    %200 = vmatpush1.msra.mxu0 0.0
    %201 = vmatprep.subr.mxu0 0.0
    %202 = vmatpush1.msra.mxu0 0.0
    %203 = vmatprep.subr.mxu0 0.0
    %204 = vmatpush1.msra.mxu0 0.0
    %205 = vmatprep.subr.mxu0 0.0
    %206 = vmatpush1.msra.mxu0 0.0
    %207 = vmatprep.subr.mxu0 0.0
    %208 = vmatpush1.msra.mxu0 0.0
    %209 = vmatprep.subr.mxu0 0.0
    %210 = vmatpush1.msra.mxu0 0.0
    %211 = vmatprep.subr.mxu0 0.0
    %212 = vmatpush1.msra.mxu0 0.0
    %213 = vmatprep.subr.mxu0 0.0
    %214 = vmatpush1.msra.mxu0 0.0
    %215 = vmatprep.subr.mxu0 0.0
    %216 = vmatpush1.msra.mxu0 0.0
    %217 = vmatprep.mubr.f32.mxu0 0.0
    %218 = vmatmul.mubr.f32.gmra.mrb[0].mxu0 %v118
    %v219 = vpop.f32.mrb[0].mxu0
    %v220 = vadd.f32 %v59, %v219
    %v221 = vpop.f32.mrb[0].mxu0
    %222 = vmatprep.mubr.f32.mxu0 0.0
    %223 = vmatmul.mubr.f32.gmra.mrb[0].mxu0 %v121
    %v224 = vpop.f32.mrb[0].mxu0
    %v225 = vadd.f32 %v64, %v224
    %v226 = vpop.f32.mrb[0].mxu0
    %227 = vmatprep.mubr.f32.mxu0 0.0
    %228 = vmatmul.mubr.f32.gmra.mrb[0].mxu0 %v124
    %v229 = vpop.f32.mrb[0].mxu0
    %v230 = vadd.f32 %v69, %v229
    %v231 = vpop.f32.mrb[0].mxu0
    %232 = vmatprep.mubr.f32.mxu0 0.0
    %233 = vmatmul.mubr.f32.gmra.mrb[0].mxu0 %v127
    %v234 = vpop.f32.mrb[0].mxu0
    %v235 = vadd.f32 %v74, %v234
    %v236 = vpop.f32.mrb[0].mxu0
    %237 = vmatprep.mubr.f32.mxu0 0.0
    %238 = vmatmul.mubr.f32.gmra.mrb[0].mxu0 %v130
    %v239 = vpop.f32.mrb[0].mxu0
    %v240 = vadd.f32 %v79, %v239
    %v241 = vpop.f32.mrb[0].mxu0
    %242 = vmatprep.mubr.f32.mxu0 0.0
    %243 = vmatmul.mubr.f32.gmra.mrb[0].mxu0 %v133
    %v244 = vpop.f32.mrb[0].mxu0
    %v245 = vadd.f32 %v84, %v244
    %v246 = vpop.f32.mrb[0].mxu0
    %247 = vmatprep.mubr.f32.mxu0 0.0
    %248 = vmatmul.mubr.f32.gmra.mrb[0].mxu0 %v136
    %v249 = vpop.f32.mrb[0].mxu0
    %v250 = vadd.f32 %v89, %v249
    %v251 = vpop.f32.mrb[0].mxu0
    %252 = vmatprep.mubr.f32.mxu0 0.0
    %253 = vmatmul.mubr.f32.gmra.mrb[0].mxu0 %v139
    %v254 = vpop.f32.mrb[0].mxu0
    %v255 = vadd.f32 %v94, %v254
    %v256 = vpop.f32.mrb[0].mxu0
    %257 = vmatprep.mubr.f32.mxu0 0.0
    %258 = vmatmul.mubr.f32.gmra.mrb[0].mxu0 %v142
    %v259 = vpop.f32.mrb[0].mxu0
    %v260 = vadd.f32 %v99, %v259
    %v261 = vpop.f32.mrb[0].mxu0
    %262 = vmatprep.mubr.f32.mxu0 0.0
    %263 = vmatmul.mubr.f32.gmra.mrb[0].mxu0 %v145
    %v264 = vpop.f32.mrb[0].mxu0
    %v265 = vadd.f32 %v104, %v264
    %v266 = vpop.f32.mrb[0].mxu0
    %267 = vmatprep.mubr.f32.mxu0 0.0
    %268 = vmatmul.mubr.f32.gmra.mrb[0].mxu0 %v148
    %v269 = vpop.f32.mrb[0].mxu0
    %v270 = vadd.f32 %v109, %v269
    %v271 = vpop.f32.mrb[0].mxu0
    %272 = vmatprep.mubr.f32.mxu0 0.0
    %273 = vmatmul.mubr.f32.gmra.mrb[0].mxu0 %v151
    %v274 = vpop.f32.mrb[0].mxu0
    %v275 = vadd.f32 %v114, %v274
    %v276 = vpop.f32.mrb[0].mxu0
    %277 = vdwg.mxu0
    %v278 = vlaneseq
    %v279 = vshrl.u32 %v278, 7
    %v280 = vadd.s32 %v279, 8
    %v281 = vld [vmem:[%s3] sm:$0x1]
    %v282 = vlaneseq
    %v283 = vshrl.u32 %v282, 7
    %v284 = vsub.s32 0, %v283
    %v285 = vrot.slane %v281, %v284
    %vm286 = vcmp.eq.s32.totalorder %v279, %v285
    %vm287 = vcmp.eq.s32.totalorder %v280, %v285
    %v288 = vsel %vm286, 1, 0
    %v289 = vsel %vm287, 1, 0
    %v290 = vcvt.s32.f32 %v288
    %v291 = vcvt.s32.f32 %v289
    %vm292 = vcmask 130048
    %v294 = vsel %vm292, %v220, 0
    %v297 = vsel %vm292, %v225, 0
    %v300 = vsel %vm292, %v230, 0
    %v303 = vsel %vm292, %v235, 0
    %v306 = vsel %vm292, %v240, 0
    %v309 = vsel %vm292, %v245, 0
    %v312 = vsel %vm292, %v250, 0
    %v315 = vsel %vm292, %v255, 0
    %v318 = vsel %vm292, %v260, 0
    %v321 = vsel %vm292, %v265, 0
    %v324 = vsel %vm292, %v270, 0
    %v327 = vsel %vm292, %v275, 0
    %329 = vmatprep.subr.mxu0 0.0
    %330 = vmatpush1.msra.mxu0 %v290
    %331 = vmatprep.subr.mxu0 0.0
    %332 = vmatpush1.msra.mxu0 %v291
    %333 = vmatprep.subr.mxu0 0.0
    %334 = vmatpush1.msra.mxu0 0.0
    %335 = vmatprep.subr.mxu0 0.0
    %336 = vmatpush1.msra.mxu0 0.0
    %337 = vmatprep.subr.mxu0 0.0
    %338 = vmatpush1.msra.mxu0 0.0
    %339 = vmatprep.subr.mxu0 0.0
    %340 = vmatpush1.msra.mxu0 0.0
    %341 = vmatprep.subr.mxu0 0.0
    %342 = vmatpush1.msra.mxu0 0.0
    %343 = vmatprep.subr.mxu0 0.0
    %344 = vmatpush1.msra.mxu0 0.0
    %345 = vmatprep.subr.mxu0 0.0
    %346 = vmatpush1.msra.mxu0 0.0
    %347 = vmatprep.subr.mxu0 0.0
    %348 = vmatpush1.msra.mxu0 0.0
    %349 = vmatprep.subr.mxu0 0.0
    %350 = vmatpush1.msra.mxu0 0.0
    %351 = vmatprep.subr.mxu0 0.0
    %352 = vmatpush1.msra.mxu0 0.0
    %353 = vmatprep.subr.mxu0 0.0
    %354 = vmatpush1.msra.mxu0 0.0
    %355 = vmatprep.subr.mxu0 0.0
    %356 = vmatpush1.msra.mxu0 0.0
    %357 = vmatprep.subr.mxu0 0.0
    %358 = vmatpush1.msra.mxu0 0.0
    %359 = vmatprep.subr.mxu0 0.0
    %360 = vmatpush1.msra.mxu0 0.0
    %361 = vmatprep.subr.mxu0 0.0
    %362 = vmatpush1.msra.mxu0 0.0
    %363 = vmatprep.subr.mxu0 0.0
    %364 = vmatpush1.msra.mxu0 0.0
    %365 = vmatprep.subr.mxu0 0.0
    %366 = vmatpush1.msra.mxu0 0.0
    %367 = vmatprep.subr.mxu0 0.0
    %368 = vmatpush1.msra.mxu0 0.0
    %369 = vmatprep.subr.mxu0 0.0
    %370 = vmatpush1.msra.mxu0 0.0
    %371 = vmatprep.subr.mxu0 0.0
    %372 = vmatpush1.msra.mxu0 0.0
    %373 = vmatprep.subr.mxu0 0.0
    %374 = vmatpush1.msra.mxu0 0.0
    %375 = vmatprep.subr.mxu0 0.0
    %376 = vmatpush1.msra.mxu0 0.0
    %377 = vmatprep.subr.mxu0 0.0
    %378 = vmatpush1.msra.mxu0 0.0
    %379 = vmatprep.subr.mxu0 0.0
    %380 = vmatpush1.msra.mxu0 0.0
    %381 = vmatprep.subr.mxu0 0.0
    %382 = vmatpush1.msra.mxu0 0.0
    %383 = vmatprep.subr.mxu0 0.0
    %384 = vmatpush1.msra.mxu0 0.0
    %385 = vmatprep.subr.mxu0 0.0
    %386 = vmatpush1.msra.mxu0 0.0
    %387 = vmatprep.subr.mxu0 0.0
    %388 = vmatpush1.msra.mxu0 0.0
    %389 = vmatprep.subr.mxu0 0.0
    %390 = vmatpush1.msra.mxu0 0.0
    %391 = vmatprep.subr.mxu0 0.0
    %392 = vmatpush1.msra.mxu0 0.0
    %393 = vmatprep.mubr.f32.mxu0 0.0
    %394 = vmatmul.mubr.f32.gmra.mrb[0].mxu0 %v294
    %v395 = vpop.f32.mrb[0].mxu0
    %v396 = vadd.f32 0.0, %v395
    %v397 = vpop.f32.mrb[0].mxu0
    %398 = vmatprep.mubr.f32.mxu0 0.0
    %399 = vmatmul.mubr.f32.gmra.mrb[0].mxu0 %v297
    %v400 = vpop.f32.mrb[0].mxu0
    %v401 = vadd.f32 0.0, %v400
    %v402 = vpop.f32.mrb[0].mxu0
    %403 = vmatprep.mubr.f32.mxu0 0.0
    %404 = vmatmul.mubr.f32.gmra.mrb[0].mxu0 %v300
    %v405 = vpop.f32.mrb[0].mxu0
    %v406 = vadd.f32 0.0, %v405
    %v407 = vpop.f32.mrb[0].mxu0
    %408 = vmatprep.mubr.f32.mxu0 0.0
    %409 = vmatmul.mubr.f32.gmra.mrb[0].mxu0 %v303
    %v410 = vpop.f32.mrb[0].mxu0
    %v411 = vadd.f32 0.0, %v410
    %v412 = vpop.f32.mrb[0].mxu0
    %413 = vmatprep.mubr.f32.mxu0 0.0
    %414 = vmatmul.mubr.f32.gmra.mrb[0].mxu0 %v306
    %v415 = vpop.f32.mrb[0].mxu0
    %v416 = vadd.f32 0.0, %v415
    %v417 = vpop.f32.mrb[0].mxu0
    %418 = vmatprep.mubr.f32.mxu0 0.0
    %419 = vmatmul.mubr.f32.gmra.mrb[0].mxu0 %v309
    %v420 = vpop.f32.mrb[0].mxu0
    %v421 = vadd.f32 0.0, %v420
    %v422 = vpop.f32.mrb[0].mxu0
    %423 = vmatprep.mubr.f32.mxu0 0.0
    %424 = vmatmul.mubr.f32.gmra.mrb[0].mxu0 %v312
    %v425 = vpop.f32.mrb[0].mxu0
    %v426 = vadd.f32 0.0, %v425
    %v427 = vpop.f32.mrb[0].mxu0
    %428 = vmatprep.mubr.f32.mxu0 0.0
    %429 = vmatmul.mubr.f32.gmra.mrb[0].mxu0 %v315
    %v430 = vpop.f32.mrb[0].mxu0
    %v431 = vadd.f32 0.0, %v430
    %v432 = vpop.f32.mrb[0].mxu0
    %433 = vmatprep.mubr.f32.mxu0 0.0
    %434 = vmatmul.mubr.f32.gmra.mrb[0].mxu0 %v318
    %v435 = vpop.f32.mrb[0].mxu0
    %v436 = vadd.f32 0.0, %v435
    %v437 = vpop.f32.mrb[0].mxu0
    %438 = vmatprep.mubr.f32.mxu0 0.0
    %439 = vmatmul.mubr.f32.gmra.mrb[0].mxu0 %v321
    %v440 = vpop.f32.mrb[0].mxu0
    %v441 = vadd.f32 0.0, %v440
    %v442 = vpop.f32.mrb[0].mxu0
    %443 = vmatprep.mubr.f32.mxu0 0.0
    %444 = vmatmul.mubr.f32.gmra.mrb[0].mxu0 %v324
    %v445 = vpop.f32.mrb[0].mxu0
    %v446 = vadd.f32 0.0, %v445
    %v447 = vpop.f32.mrb[0].mxu0
    %448 = vmatprep.mubr.f32.mxu0 0.0
    %449 = vmatmul.mubr.f32.gmra.mrb[0].mxu0 %v327
    %v450 = vpop.f32.mrb[0].mxu0
    %v451 = vadd.f32 0.0, %v450
    %v452 = vpop.f32.mrb[0].mxu0
    %453 = vdwg.mxu0
    %v454 = vld [vmem:[%s3 + $0x1] sm:$0x1]
    %v455 = vlaneseq
    %v456 = vshrl.u32 %v455, 7
    %v457 = vsub.s32 0, %v456
    %v458 = vrot.slane %v454, %v457
    %vm459 = vcmp.eq.s32.totalorder %v279, %v458
    %vm460 = vcmp.eq.s32.totalorder %v280, %v458
    %v461 = vsel %vm459, 1, 0
    %v462 = vsel %vm460, 1, 0
    %v463 = vcvt.s32.f32 %v461
    %v464 = vcvt.s32.f32 %v462
    %465 = vmatprep.subr.mxu0 0.0
    %466 = vmatpush1.msra.mxu0 %v463
    %467 = vmatprep.subr.mxu0 0.0
    %468 = vmatpush1.msra.mxu0 %v464
    %469 = vmatprep.subr.mxu0 0.0
    %470 = vmatpush1.msra.mxu0 0.0
    %471 = vmatprep.subr.mxu0 0.0
    %472 = vmatpush1.msra.mxu0 0.0
    %473 = vmatprep.subr.mxu0 0.0
    %474 = vmatpush1.msra.mxu0 0.0
    %475 = vmatprep.subr.mxu0 0.0
    %476 = vmatpush1.msra.mxu0 0.0
    %477 = vmatprep.subr.mxu0 0.0
    %478 = vmatpush1.msra.mxu0 0.0
    %479 = vmatprep.subr.mxu0 0.0
    %480 = vmatpush1.msra.mxu0 0.0
    %481 = vmatprep.subr.mxu0 0.0
    %482 = vmatpush1.msra.mxu0 0.0
    %483 = vmatprep.subr.mxu0 0.0
    %484 = vmatpush1.msra.mxu0 0.0
    %485 = vmatprep.subr.mxu0 0.0
    %486 = vmatpush1.msra.mxu0 0.0
    %487 = vmatprep.subr.mxu0 0.0
    %488 = vmatpush1.msra.mxu0 0.0
    %489 = vmatprep.subr.mxu0 0.0
    %490 = vmatpush1.msra.mxu0 0.0
    %491 = vmatprep.subr.mxu0 0.0
    %492 = vmatpush1.msra.mxu0 0.0
    %493 = vmatprep.subr.mxu0 0.0
    %494 = vmatpush1.msra.mxu0 0.0
    %495 = vmatprep.subr.mxu0 0.0
    %496 = vmatpush1.msra.mxu0 0.0
    %497 = vmatprep.subr.mxu0 0.0
    %498 = vmatpush1.msra.mxu0 0.0
    %499 = vmatprep.subr.mxu0 0.0
    %500 = vmatpush1.msra.mxu0 0.0
    %501 = vmatprep.subr.mxu0 0.0
    %502 = vmatpush1.msra.mxu0 0.0
    %503 = vmatprep.subr.mxu0 0.0
    %504 = vmatpush1.msra.mxu0 0.0
    %505 = vmatprep.subr.mxu0 0.0
    %506 = vmatpush1.msra.mxu0 0.0
    %507 = vmatprep.subr.mxu0 0.0
    %508 = vmatpush1.msra.mxu0 0.0
    %509 = vmatprep.subr.mxu0 0.0
    %510 = vmatpush1.msra.mxu0 0.0
    %511 = vmatprep.subr.mxu0 0.0
    %512 = vmatpush1.msra.mxu0 0.0
    %513 = vmatprep.subr.mxu0 0.0
    %514 = vmatpush1.msra.mxu0 0.0
    %515 = vmatprep.subr.mxu0 0.0
    %516 = vmatpush1.msra.mxu0 0.0
    %517 = vmatprep.subr.mxu0 0.0
    %518 = vmatpush1.msra.mxu0 0.0
    %519 = vmatprep.subr.mxu0 0.0
    %520 = vmatpush1.msra.mxu0 0.0
    %521 = vmatprep.subr.mxu0 0.0
    %522 = vmatpush1.msra.mxu0 0.0
    %523 = vmatprep.subr.mxu0 0.0
    %524 = vmatpush1.msra.mxu0 0.0
    %525 = vmatprep.subr.mxu0 0.0
    %526 = vmatpush1.msra.mxu0 0.0
    %527 = vmatprep.subr.mxu0 0.0
    %528 = vmatpush1.msra.mxu0 0.0
    %529 = vmatprep.mubr.f32.mxu0 0.0
    %530 = vmatmul.mubr.f32.gmra.mrb[0].mxu0 %v294
    %v531 = vpop.f32.mrb[0].mxu0
    %v532 = vadd.f32 0.0, %v531
    %v533 = vpop.f32.mrb[0].mxu0
    %534 = vmatprep.mubr.f32.mxu0 0.0
    %535 = vmatmul.mubr.f32.gmra.mrb[0].mxu0 %v297
    %v536 = vpop.f32.mrb[0].mxu0
    %v537 = vadd.f32 0.0, %v536
    %v538 = vpop.f32.mrb[0].mxu0
    %539 = vmatprep.mubr.f32.mxu0 0.0
    %540 = vmatmul.mubr.f32.gmra.mrb[0].mxu0 %v300
    %v541 = vpop.f32.mrb[0].mxu0
    %v542 = vadd.f32 0.0, %v541
    %v543 = vpop.f32.mrb[0].mxu0
    %544 = vmatprep.mubr.f32.mxu0 0.0
    %545 = vmatmul.mubr.f32.gmra.mrb[0].mxu0 %v303
    %v546 = vpop.f32.mrb[0].mxu0
    %v547 = vadd.f32 0.0, %v546
    %v548 = vpop.f32.mrb[0].mxu0
    %549 = vmatprep.mubr.f32.mxu0 0.0
    %550 = vmatmul.mubr.f32.gmra.mrb[0].mxu0 %v306
    %v551 = vpop.f32.mrb[0].mxu0
    %v552 = vadd.f32 0.0, %v551
    %v553 = vpop.f32.mrb[0].mxu0
    %554 = vmatprep.mubr.f32.mxu0 0.0
    %555 = vmatmul.mubr.f32.gmra.mrb[0].mxu0 %v309
    %v556 = vpop.f32.mrb[0].mxu0
    %v557 = vadd.f32 0.0, %v556
    %v558 = vpop.f32.mrb[0].mxu0
    %559 = vmatprep.mubr.f32.mxu0 0.0
    %560 = vmatmul.mubr.f32.gmra.mrb[0].mxu0 %v312
    %v561 = vpop.f32.mrb[0].mxu0
    %v562 = vadd.f32 0.0, %v561
    %v563 = vpop.f32.mrb[0].mxu0
    %564 = vmatprep.mubr.f32.mxu0 0.0
    %565 = vmatmul.mubr.f32.gmra.mrb[0].mxu0 %v315
    %v566 = vpop.f32.mrb[0].mxu0
    %v567 = vadd.f32 0.0, %v566
    %v568 = vpop.f32.mrb[0].mxu0
    %569 = vmatprep.mubr.f32.mxu0 0.0
    %570 = vmatmul.mubr.f32.gmra.mrb[0].mxu0 %v318
    %v571 = vpop.f32.mrb[0].mxu0
    %v572 = vadd.f32 0.0, %v571
    %v573 = vpop.f32.mrb[0].mxu0
    %574 = vmatprep.mubr.f32.mxu0 0.0
    %575 = vmatmul.mubr.f32.gmra.mrb[0].mxu0 %v321
    %v576 = vpop.f32.mrb[0].mxu0
    %v577 = vadd.f32 0.0, %v576
    %v578 = vpop.f32.mrb[0].mxu0
    %579 = vmatprep.mubr.f32.mxu0 0.0
    %580 = vmatmul.mubr.f32.gmra.mrb[0].mxu0 %v324
    %v581 = vpop.f32.mrb[0].mxu0
    %v582 = vadd.f32 0.0, %v581
    %v583 = vpop.f32.mrb[0].mxu0
    %584 = vmatprep.mubr.f32.mxu0 0.0
    %585 = vmatmul.mubr.f32.gmra.mrb[0].mxu0 %v327
    %v586 = vpop.f32.mrb[0].mxu0
    %v587 = vadd.f32 0.0, %v586
    %v588 = vpop.f32.mrb[0].mxu0
    %589 = vdwg.mxu0
    %v590 = vld [vmem:[%s3 + $0x2] sm:$0x1]
    %v591 = vlaneseq
    %v592 = vshrl.u32 %v591, 7
    %v593 = vsub.s32 0, %v592
    %v594 = vrot.slane %v590, %v593
    %vm595 = vcmp.eq.s32.totalorder %v279, %v594
    %vm596 = vcmp.eq.s32.totalorder %v280, %v594
    %v597 = vsel %vm595, 1, 0
    %v598 = vsel %vm596, 1, 0
    %v599 = vcvt.s32.f32 %v597
    %v600 = vcvt.s32.f32 %v598
    %601 = vmatprep.subr.mxu0 0.0
    %602 = vmatpush1.msra.mxu0 %v599
    %603 = vmatprep.subr.mxu0 0.0
    %604 = vmatpush1.msra.mxu0 %v600
    %605 = vmatprep.subr.mxu0 0.0
    %606 = vmatpush1.msra.mxu0 0.0
    %607 = vmatprep.subr.mxu0 0.0
    %608 = vmatpush1.msra.mxu0 0.0
    %609 = vmatprep.subr.mxu0 0.0
    %610 = vmatpush1.msra.mxu0 0.0
    %611 = vmatprep.subr.mxu0 0.0
    %612 = vmatpush1.msra.mxu0 0.0
    %613 = vmatprep.subr.mxu0 0.0
    %614 = vmatpush1.msra.mxu0 0.0
    %615 = vmatprep.subr.mxu0 0.0
    %616 = vmatpush1.msra.mxu0 0.0
    %617 = vmatprep.subr.mxu0 0.0
    %618 = vmatpush1.msra.mxu0 0.0
    %619 = vmatprep.subr.mxu0 0.0
    %620 = vmatpush1.msra.mxu0 0.0
    %621 = vmatprep.subr.mxu0 0.0
    %622 = vmatpush1.msra.mxu0 0.0
    %623 = vmatprep.subr.mxu0 0.0
    %624 = vmatpush1.msra.mxu0 0.0
    %625 = vmatprep.subr.mxu0 0.0
    %626 = vmatpush1.msra.mxu0 0.0
    %627 = vmatprep.subr.mxu0 0.0
    %628 = vmatpush1.msra.mxu0 0.0
    %629 = vmatprep.subr.mxu0 0.0
    %630 = vmatpush1.msra.mxu0 0.0
    %631 = vmatprep.subr.mxu0 0.0
    %632 = vmatpush1.msra.mxu0 0.0
    %633 = vmatprep.subr.mxu0 0.0
    %634 = vmatpush1.msra.mxu0 0.0
    %635 = vmatprep.subr.mxu0 0.0
    %636 = vmatpush1.msra.mxu0 0.0
    %637 = vmatprep.subr.mxu0 0.0
    %638 = vmatpush1.msra.mxu0 0.0
    %639 = vmatprep.subr.mxu0 0.0
    %640 = vmatpush1.msra.mxu0 0.0
    %641 = vmatprep.subr.mxu0 0.0
    %642 = vmatpush1.msra.mxu0 0.0
    %643 = vmatprep.subr.mxu0 0.0
    %644 = vmatpush1.msra.mxu0 0.0
    %645 = vmatprep.subr.mxu0 0.0
    %646 = vmatpush1.msra.mxu0 0.0
    %647 = vmatprep.subr.mxu0 0.0
    %648 = vmatpush1.msra.mxu0 0.0
    %649 = vmatprep.subr.mxu0 0.0
    %650 = vmatpush1.msra.mxu0 0.0
    %651 = vmatprep.subr.mxu0 0.0
    %652 = vmatpush1.msra.mxu0 0.0
    %653 = vmatprep.subr.mxu0 0.0
    %654 = vmatpush1.msra.mxu0 0.0
    %655 = vmatprep.subr.mxu0 0.0
    %656 = vmatpush1.msra.mxu0 0.0
    %657 = vmatprep.subr.mxu0 0.0
    %658 = vmatpush1.msra.mxu0 0.0
    %659 = vmatprep.subr.mxu0 0.0
    %660 = vmatpush1.msra.mxu0 0.0
    %661 = vmatprep.subr.mxu0 0.0
    %662 = vmatpush1.msra.mxu0 0.0
    %663 = vmatprep.subr.mxu0 0.0
    %664 = vmatpush1.msra.mxu0 0.0
    %665 = vmatprep.mubr.f32.mxu0 0.0
    %666 = vmatmul.mubr.f32.gmra.mrb[0].mxu0 %v294
    %v667 = vpop.f32.mrb[0].mxu0
    %v668 = vadd.f32 0.0, %v667
    %v669 = vpop.f32.mrb[0].mxu0
    %670 = vmatprep.mubr.f32.mxu0 0.0
    %671 = vmatmul.mubr.f32.gmra.mrb[0].mxu0 %v297
    %v672 = vpop.f32.mrb[0].mxu0
    %v673 = vadd.f32 0.0, %v672
    %v674 = vpop.f32.mrb[0].mxu0
    %675 = vmatprep.mubr.f32.mxu0 0.0
    %676 = vmatmul.mubr.f32.gmra.mrb[0].mxu0 %v300
    %v677 = vpop.f32.mrb[0].mxu0
    %v678 = vadd.f32 0.0, %v677
    %v679 = vpop.f32.mrb[0].mxu0
    %680 = vmatprep.mubr.f32.mxu0 0.0
    %681 = vmatmul.mubr.f32.gmra.mrb[0].mxu0 %v303
    %v682 = vpop.f32.mrb[0].mxu0
    %v683 = vadd.f32 0.0, %v682
    %v684 = vpop.f32.mrb[0].mxu0
    %685 = vmatprep.mubr.f32.mxu0 0.0
    %686 = vmatmul.mubr.f32.gmra.mrb[0].mxu0 %v306
    %v687 = vpop.f32.mrb[0].mxu0
    %v688 = vadd.f32 0.0, %v687
    %v689 = vpop.f32.mrb[0].mxu0
    %690 = vmatprep.mubr.f32.mxu0 0.0
    %691 = vmatmul.mubr.f32.gmra.mrb[0].mxu0 %v309
    %v692 = vpop.f32.mrb[0].mxu0
    %v693 = vadd.f32 0.0, %v692
    %v694 = vpop.f32.mrb[0].mxu0
    %695 = vmatprep.mubr.f32.mxu0 0.0
    %696 = vmatmul.mubr.f32.gmra.mrb[0].mxu0 %v312
    %v697 = vpop.f32.mrb[0].mxu0
    %v698 = vadd.f32 0.0, %v697
    %v699 = vpop.f32.mrb[0].mxu0
    %700 = vmatprep.mubr.f32.mxu0 0.0
    %701 = vmatmul.mubr.f32.gmra.mrb[0].mxu0 %v315
    %v702 = vpop.f32.mrb[0].mxu0
    %v703 = vadd.f32 0.0, %v702
    %v704 = vpop.f32.mrb[0].mxu0
    %705 = vmatprep.mubr.f32.mxu0 0.0
    %706 = vmatmul.mubr.f32.gmra.mrb[0].mxu0 %v318
    %v707 = vpop.f32.mrb[0].mxu0
    %v708 = vadd.f32 0.0, %v707
    %v709 = vpop.f32.mrb[0].mxu0
    %710 = vmatprep.mubr.f32.mxu0 0.0
    %711 = vmatmul.mubr.f32.gmra.mrb[0].mxu0 %v321
    %v712 = vpop.f32.mrb[0].mxu0
    %v713 = vadd.f32 0.0, %v712
    %v714 = vpop.f32.mrb[0].mxu0
    %715 = vmatprep.mubr.f32.mxu0 0.0
    %716 = vmatmul.mubr.f32.gmra.mrb[0].mxu0 %v324
    %v717 = vpop.f32.mrb[0].mxu0
    %v718 = vadd.f32 0.0, %v717
    %v719 = vpop.f32.mrb[0].mxu0
    %720 = vmatprep.mubr.f32.mxu0 0.0
    %721 = vmatmul.mubr.f32.gmra.mrb[0].mxu0 %v327
    %v722 = vpop.f32.mrb[0].mxu0
    %v723 = vadd.f32 0.0, %v722
    %v724 = vpop.f32.mrb[0].mxu0
    %725 = vdwg.mxu0
    %v726 = vmul.f32 %v552, %v708
    %v727 = vmul.f32 %v557, %v713
    %v728 = vmul.f32 %v562, %v718
    %v729 = vmul.f32 %v567, %v723
    %v730 = vmul.f32 %v688, %v572
    %v731 = vmul.f32 %v693, %v577
    %v732 = vmul.f32 %v698, %v582
    %v733 = vmul.f32 %v703, %v587
    %v734 = vadd.f32 %v726, %v730
    %v735 = vadd.f32 %v727, %v731
    %v736 = vadd.f32 %v728, %v732
    %v737 = vadd.f32 %v729, %v733
    %v738 = vmul.f32 %v396, %v734
    %v739 = vmul.f32 %v401, %v735
    %v740 = vmul.f32 %v406, %v736
    %v741 = vmul.f32 %v411, %v737
    %v742 = vmul.f32 %v416, %v708
    %v743 = vmul.f32 %v421, %v713
    %v744 = vmul.f32 %v426, %v718
    %v745 = vmul.f32 %v431, %v723
    %v746 = vmul.f32 %v688, %v436
    %v747 = vmul.f32 %v693, %v441
    %v748 = vmul.f32 %v698, %v446
    %v749 = vmul.f32 %v703, %v451
    %v750 = vadd.f32 %v742, %v746
    %v751 = vadd.f32 %v743, %v747
    %v752 = vadd.f32 %v744, %v748
    %v753 = vadd.f32 %v745, %v749
    %v754 = vmul.f32 %v532, %v750
    %v755 = vmul.f32 %v537, %v751
    %v756 = vmul.f32 %v542, %v752
    %v757 = vmul.f32 %v547, %v753
    %v758 = vadd.f32 %v738, %v754
    %v759 = vadd.f32 %v739, %v755
    %v760 = vadd.f32 %v740, %v756
    %v761 = vadd.f32 %v741, %v757
    %v762 = vmul.f32 %v416, %v572
    %v763 = vmul.f32 %v421, %v577
    %v764 = vmul.f32 %v426, %v582
    %v765 = vmul.f32 %v431, %v587
    %v766 = vmul.f32 %v552, %v436
    %v767 = vmul.f32 %v557, %v441
    %v768 = vmul.f32 %v562, %v446
    %v769 = vmul.f32 %v567, %v451
    %v770 = vadd.f32 %v762, %v766
    %v771 = vadd.f32 %v763, %v767
    %v772 = vadd.f32 %v764, %v768
    %v773 = vadd.f32 %v765, %v769
    %v774 = vmul.f32 %v668, %v770
    %v775 = vmul.f32 %v673, %v771
    %v776 = vmul.f32 %v678, %v772
    %v777 = vmul.f32 %v683, %v773
    %v778 = vadd.f32 %v758, %v774
    %v779 = vadd.f32 %v759, %v775
    %v780 = vadd.f32 %v760, %v776
    %v781 = vadd.f32 %v761, %v777
    %vm782 = vcmask 64512
    %v783 = vsel %vm782, %v778, 0.0
    %v784 = vsel %vm782, %v779, 0.0
    %v785 = vadd.f32 %v783, %v784
    %v786 = vsel %vm782, %v780, 0.0
    %v787 = vadd.f32 %v785, %v786
    %v788 = vsel %vm782, %v781, 0.0
    %v789 = vadd.f32 %v787, %v788
    %v790 = vrot.slane %v789, 4
    %v791 = vadd.f32 %v789, %v790
    %v792 = vrot.slane %v791, 2
    %v793 = vadd.f32 %v791, %v792
    %v794 = vrot.slane %v793, 1
    %v795 = vadd.f32 %v793, %v794
    %v796 = vmul.f32 %v795, 0.083333336
    %v797 = vmul.f32 %v796, 1.442695
    %v798 = vpow.pop %v797
    %vm799 = vcmask 57344
    %800 = vst.msk [vmem:[#allocation6] sm:$0x1] %vm799, %v798
    %v801 = vlaneseq
    %v802 = vand.u32 %v801, 127
    %v803 = vld [vmem:[%s4] sm:$0xff]
    %804 = vset.pattern.permute.xlu0 0
    %805 = vperm.xlu0 %804, %v803
    %v806 = vpop.permute.xlu0 %805
    %vm807 = vcmp.eq.s32.totalorder %v802, %v806
    %v808 = vsel %vm807, 1, 0
    %v809 = vcvt.s32.f32 %v808
    %810 = vset.pattern.permute.xlu0 1
    %811 = vperm.xlu0 %810, %v803
    %v812 = vpop.permute.xlu0 %811
    %vm813 = vcmp.eq.s32.totalorder %v802, %v812
    %v814 = vsel %vm813, 1, 0
    %v815 = vcvt.s32.f32 %v814
    %v816 = vadd.f32 %v809, %v815
    %817 = vset.pattern.permute.xlu0 2
    %818 = vperm.xlu0 %817, %v803
    %v819 = vpop.permute.xlu0 %818
    %vm820 = vcmp.eq.s32.totalorder %v802, %v819
    %v821 = vsel %vm820, 1, 0
    %v822 = vcvt.s32.f32 %v821
    %v823 = vadd.f32 %v816, %v822
    %v825 = vsel %vm782, %v798, 0
    %827 = vmatprep.subr.mxu0 0.0
    %828 = vmatpush1.msra.mxu0 %v823
    %829 = vmatprep.subr.mxu0 0.0
    %830 = vmatpush1.msra.mxu0 0.0
    %831 = vmatprep.subr.mxu0 0.0
    %832 = vmatpush1.msra.mxu0 0.0
    %833 = vmatprep.subr.mxu0 0.0
    %834 = vmatpush1.msra.mxu0 0.0
    %835 = vmatprep.subr.mxu0 0.0
    %836 = vmatpush1.msra.mxu0 0.0
    %837 = vmatprep.subr.mxu0 0.0
    %838 = vmatpush1.msra.mxu0 0.0
    %839 = vmatprep.subr.mxu0 0.0
    %840 = vmatpush1.msra.mxu0 0.0
    %841 = vmatprep.subr.mxu0 0.0
    %842 = vmatpush1.msra.mxu0 0.0
    %843 = vmatprep.subr.mxu0 0.0
    %844 = vmatpush1.msra.mxu0 0.0
    %845 = vmatprep.subr.mxu0 0.0
    %846 = vmatpush1.msra.mxu0 0.0
    %847 = vmatprep.subr.mxu0 0.0
    %848 = vmatpush1.msra.mxu0 0.0
    %849 = vmatprep.subr.mxu0 0.0
    %850 = vmatpush1.msra.mxu0 0.0
    %851 = vmatprep.subr.mxu0 0.0
    %852 = vmatpush1.msra.mxu0 0.0
    %853 = vmatprep.subr.mxu0 0.0
    %854 = vmatpush1.msra.mxu0 0.0
    %855 = vmatprep.subr.mxu0 0.0
    %856 = vmatpush1.msra.mxu0 0.0
    %857 = vmatprep.subr.mxu0 0.0
    %858 = vmatpush1.msra.mxu0 0.0
    %859 = vmatprep.subr.mxu0 0.0
    %860 = vmatpush1.msra.mxu0 0.0
    %861 = vmatprep.subr.mxu0 0.0
    %862 = vmatpush1.msra.mxu0 0.0
    %863 = vmatprep.subr.mxu0 0.0
    %864 = vmatpush1.msra.mxu0 0.0
    %865 = vmatprep.subr.mxu0 0.0
    %866 = vmatpush1.msra.mxu0 0.0
    %867 = vmatprep.subr.mxu0 0.0
    %868 = vmatpush1.msra.mxu0 0.0
    %869 = vmatprep.subr.mxu0 0.0
    %870 = vmatpush1.msra.mxu0 0.0
    %871 = vmatprep.subr.mxu0 0.0
    %872 = vmatpush1.msra.mxu0 0.0
    %873 = vmatprep.subr.mxu0 0.0
    %874 = vmatpush1.msra.mxu0 0.0
    %875 = vmatprep.subr.mxu0 0.0
    %876 = vmatpush1.msra.mxu0 0.0
    %877 = vmatprep.subr.mxu0 0.0
    %878 = vmatpush1.msra.mxu0 0.0
    %879 = vmatprep.subr.mxu0 0.0
    %880 = vmatpush1.msra.mxu0 0.0
    %881 = vmatprep.subr.mxu0 0.0
    %882 = vmatpush1.msra.mxu0 0.0
    %883 = vmatprep.subr.mxu0 0.0
    %884 = vmatpush1.msra.mxu0 0.0
    %885 = vmatprep.subr.mxu0 0.0
    %886 = vmatpush1.msra.mxu0 0.0
    %887 = vmatprep.subr.mxu0 0.0
    %888 = vmatpush1.msra.mxu0 0.0
    %889 = vmatprep.subr.mxu0 0.0
    %890 = vmatpush1.msra.mxu0 0.0
    %891 = vmatprep.mubr.f32.mxu0 0.0
    %892 = vmatmul.mubr.f32.gmra.mrb[0].mxu0 %v825
    %v893 = vpop.f32.mrb[0].mxu0
    %v894 = vadd.f32 0.0, %v893
    %v895 = vpop.f32.mrb[0].mxu0
    %896 = vdwg.mxu0
    %vm897 = vcmask 188416
    %898 = vst.msk [vmem:[#allocation4] sm:$0x1] %vm897, %v894
    %v899 = vld [vmem:[%s5] sm:$0xff]
    %v900 = vld [vmem:[%s5 + $0x8] sm:$0xff]
    %v901 = vld [vmem:[%s5 + $0x10] sm:$0xff]
    %902 = vset.pattern.permute.xlu0 0
    %903 = vperm.xlu0 %902, %v899
    %v904 = vpop.permute.xlu0 %903
    %905 = vset.pattern.permute.xlu0 0
    %906 = vperm.xlu0 %905, %v900
    %v907 = vpop.permute.xlu0 %906
    %908 = vset.pattern.permute.xlu0 0
    %909 = vperm.xlu0 %908, %v901
    %v910 = vpop.permute.xlu0 %909
    %vm911 = vcmp.eq.s32.totalorder %v802, %v904
    %vm912 = vcmp.eq.s32.totalorder %v802, %v907
    %vm913 = vcmp.eq.s32.totalorder %v802, %v910
    %v914 = vsel %vm911, 1, 0
    %v915 = vsel %vm912, 1, 0
    %v916 = vsel %vm913, 1, 0
    %v917 = vcvt.s32.f32 %v914
    %v918 = vcvt.s32.f32 %v915
    %v919 = vcvt.s32.f32 %v916
    %920 = vset.pattern.permute.xlu0 1
    %921 = vperm.xlu0 %920, %v899
    %v922 = vpop.permute.xlu0 %921
    %923 = vset.pattern.permute.xlu0 1
    %924 = vperm.xlu0 %923, %v900
    %v925 = vpop.permute.xlu0 %924
    %926 = vset.pattern.permute.xlu0 1
    %927 = vperm.xlu0 %926, %v901
    %v928 = vpop.permute.xlu0 %927
    %vm929 = vcmp.eq.s32.totalorder %v802, %v922
    %vm930 = vcmp.eq.s32.totalorder %v802, %v925
    %vm931 = vcmp.eq.s32.totalorder %v802, %v928
    %v932 = vsel %vm929, 1, 0
    %v933 = vsel %vm930, 1, 0
    %v934 = vsel %vm931, 1, 0
    %v935 = vcvt.s32.f32 %v932
    %v936 = vcvt.s32.f32 %v933
    %v937 = vcvt.s32.f32 %v934
    %v938 = vadd.f32 %v917, %v935
    %v939 = vadd.f32 %v918, %v936
    %v940 = vadd.f32 %v919, %v937
    %vm941 = vcmask 195584
    %v943 = vsel %vm941, %v894, 0
    %945 = vmatprep.subr.mxu0 0.0
    %946 = vmatpush1.msra.mxu0 %v938
    %947 = vmatprep.subr.mxu0 0.0
    %948 = vmatpush1.msra.mxu0 %v939
    %949 = vmatprep.subr.mxu0 0.0
    %950 = vmatpush1.msra.mxu0 %v940
    %951 = vmatprep.subr.mxu0 0.0
    %952 = vmatpush1.msra.mxu0 0.0
    %953 = vmatprep.subr.mxu0 0.0
    %954 = vmatpush1.msra.mxu0 0.0
    %955 = vmatprep.subr.mxu0 0.0
    %956 = vmatpush1.msra.mxu0 0.0
    %957 = vmatprep.subr.mxu0 0.0
    %958 = vmatpush1.msra.mxu0 0.0
    %959 = vmatprep.subr.mxu0 0.0
    %960 = vmatpush1.msra.mxu0 0.0
    %961 = vmatprep.subr.mxu0 0.0
    %962 = vmatpush1.msra.mxu0 0.0
    %963 = vmatprep.subr.mxu0 0.0
    %964 = vmatpush1.msra.mxu0 0.0
    %965 = vmatprep.subr.mxu0 0.0
    %966 = vmatpush1.msra.mxu0 0.0
    %967 = vmatprep.subr.mxu0 0.0
    %968 = vmatpush1.msra.mxu0 0.0
    %969 = vmatprep.subr.mxu0 0.0
    %970 = vmatpush1.msra.mxu0 0.0
    %971 = vmatprep.subr.mxu0 0.0
    %972 = vmatpush1.msra.mxu0 0.0
    %973 = vmatprep.subr.mxu0 0.0
    %974 = vmatpush1.msra.mxu0 0.0
    %975 = vmatprep.subr.mxu0 0.0
    %976 = vmatpush1.msra.mxu0 0.0
    %977 = vmatprep.subr.mxu0 0.0
    %978 = vmatpush1.msra.mxu0 0.0
    %979 = vmatprep.subr.mxu0 0.0
    %980 = vmatpush1.msra.mxu0 0.0
    %981 = vmatprep.subr.mxu0 0.0
    %982 = vmatpush1.msra.mxu0 0.0
    %983 = vmatprep.subr.mxu0 0.0
    %984 = vmatpush1.msra.mxu0 0.0
    %985 = vmatprep.subr.mxu0 0.0
    %986 = vmatpush1.msra.mxu0 0.0
    %987 = vmatprep.subr.mxu0 0.0
    %988 = vmatpush1.msra.mxu0 0.0
    %989 = vmatprep.subr.mxu0 0.0
    %990 = vmatpush1.msra.mxu0 0.0
    %991 = vmatprep.subr.mxu0 0.0
    %992 = vmatpush1.msra.mxu0 0.0
    %993 = vmatprep.subr.mxu0 0.0
    %994 = vmatpush1.msra.mxu0 0.0
    %995 = vmatprep.subr.mxu0 0.0
    %996 = vmatpush1.msra.mxu0 0.0
    %997 = vmatprep.subr.mxu0 0.0
    %998 = vmatpush1.msra.mxu0 0.0
    %999 = vmatprep.subr.mxu0 0.0
    %1000 = vmatpush1.msra.mxu0 0.0
    %1001 = vmatprep.subr.mxu0 0.0
    %1002 = vmatpush1.msra.mxu0 0.0
    %1003 = vmatprep.subr.mxu0 0.0
    %1004 = vmatpush1.msra.mxu0 0.0
    %1005 = vmatprep.subr.mxu0 0.0
    %1006 = vmatpush1.msra.mxu0 0.0
    %1007 = vmatprep.subr.mxu0 0.0
    %1008 = vmatpush1.msra.mxu0 0.0
    %1009 = vmatprep.mubr.f32.mxu0 0.0
    %1010 = vmatmul.mubr.f32.gmra.mrb[0].mxu0 %v943
    %v1011 = vpop.f32.mrb[0].mxu0
    %v1012 = vadd.f32 0.0, %v1011
    %v1013 = vpop.f32.mrb[0].mxu0
    %1014 = vdwg.mxu0
    %vm1015 = vcmask 122880
    %1016 = vst.msk [vmem:[#allocation2] sm:$0x1] %vm1015, %v1012
    // Predicated region
    $region26: #{sparse_two_clique_attention.1} parent=1 // pred_check
      _
    $region27: #{sparse_two_clique_attention.1} parent=1 // pred_check_branch
      %1018 = sbr.rel (0) target = $region29
    $region28: #{sparse_two_clique_attention.1} parent=1 // pred_region
      %s1020 = ssub.s32 16, 16
      %1021 = vsyncadd [#allocation3], %s1020
      %s1023 = sshll.u32 [#allocation2], 4
      %s1024 = int_to_ptr.vmem [resolvable:$true] %s1023
      %1026 = dma.vmem_to_hbm [thread:$0]  %s1024, 16, %s6, [#allocation3]
    $region29: #{sparse_two_clique_attention.1} parent=1 // pred_fallthru
      _
    // Predicated region
    $region30: #{sparse_two_clique_attention.1} parent=1 // pred_check
      _
    $region31: #{sparse_two_clique_attention.1} parent=1 // pred_check_branch
      %1028 = sbr.rel (0) target = $region33
    $region32: #{sparse_two_clique_attention.1} parent=1 // pred_region
      %s1030 = ssub.s32 16, 16
      %1031 = vsyncadd [#allocation5], %s1030
      %s1033 = sshll.u32 [#allocation4], 4
      %s1034 = int_to_ptr.vmem [resolvable:$true] %s1033
      %1036 = dma.vmem_to_hbm [thread:$0]  %s1034, 16, %s7, [#allocation5]
    $region33: #{sparse_two_clique_attention.1} parent=1 // pred_fallthru
      _
    // Predicated region
    $region34: #{sparse_two_clique_attention.1} parent=1 // pred_check
      _
    $region35: #{sparse_two_clique_attention.1} parent=1 // pred_check_branch
      %1038 = sbr.rel (0) target = $region37
    $region36: #{sparse_two_clique_attention.1} parent=1 // pred_region
      %s1040 = ssub.s32 16, 16
      %1041 = vsyncadd [#allocation5], %s1040
      %s1043 = sshll.u32 [#allocation6], 4
      %s1044 = int_to_ptr.vmem [resolvable:$true] %s1043
      %1046 = dma.vmem_to_hbm [thread:$0]  %s1044, 16, %s8, [#allocation5]
    $region37: #{sparse_two_clique_attention.1} parent=1 // pred_fallthru
      _
    // Predicated region
    $region38: #{sparse_two_clique_attention.1} parent=1 // pred_check
      _
    $region39: #{sparse_two_clique_attention.1} parent=1 // pred_check_branch
      %1048 = sbr.rel (0) target = $region41
    $region40: #{sparse_two_clique_attention.1} parent=1 // pred_region
      %1049 = dma.done [#allocation3], 16
    $region41: #{sparse_two_clique_attention.1} parent=1 // pred_fallthru
      _
    // Predicated region
    $region42: #{sparse_two_clique_attention.1} parent=1 // pred_check
      _
    $region43: #{sparse_two_clique_attention.1} parent=1 // pred_check_branch
      %1051 = sbr.rel (0) target = $region45
    $region44: #{sparse_two_clique_attention.1} parent=1 // pred_region
      %1052 = dma.done [#allocation5], 16
    $region45: #{sparse_two_clique_attention.1} parent=1 // pred_fallthru
      _
    // Predicated region
    $region46: #{sparse_two_clique_attention.1} parent=1 // pred_check
      _
    $region47: #{sparse_two_clique_attention.1} parent=1 // pred_check_branch
      %1054 = sbr.rel (0) target = $region49
    $region48: #{sparse_two_clique_attention.1} parent=1 // pred_region
      %1055 = dma.done [#allocation5], 16
    $region49: #{sparse_two_clique_attention.1} parent=1 // pred_fallthru
      _
    %1056 = vsyncpa [#allocation3], 1
    %1057 = vsyncpa [#allocation5], 1

</llo_original>
